<compile_context>
chip_gen: v7x
topology: tpu7x:2x2x1
jax: 0.10.0
libtpu: 0.0.40
codegen_flags: <defaults>
</compile_context>

<pallas_src>
import jax
import jax.numpy as jnp
from jax.experimental import pallas as pl
from jax.experimental.pallas import tpu as pltpu

_LANE = 128


def _round_up(v, m):
    return (v + m - 1) // m * m


def _device_vmem_limit_bytes():
    """Scoped-VMEM limit derived from the device's physical VMEM capacity."""
    cap = None
    try:
        cap = int(pltpu.get_tpu_info().vmem_capacity_bytes)
    except Exception:
        cap = None
    if cap is None:
        try:
            kind = jax.devices()[0].device_kind.lower()
            cap = 64 * 1024 * 1024 if "v7" in kind else 128 * 1024 * 1024
        except Exception:
            cap = 64 * 1024 * 1024  # conservative default
    # Leave headroom under physical capacity (v7x: 64 MiB -> 48 MiB,
    # v5e/v6e: 128 MiB -> 96 MiB).
    return min(cap * 3 // 4, 100 * 1024 * 1024)


def _pick_tiles(B, N, D, H_pad, vmem_limit_bytes):
    """Choose (block_B, tile_N). tile_N is a multiple of 8; block_B is either
    == B (full dim) or a multiple of 8, as the output-block sublane dim
    requires. Sizes are bounded by an H_pad-aware VMEM budget."""
    d_lanes = _round_up(D, _LANE)
    # Per activation row resident in VMEM at once:
    #   x block: 2 pipeline buffers * f32 * lane-padded D
    #   kernel temporaries: ~3 f32 (rows, H_pad) slabs (h layers + bf16 copies)
    per_row = 2 * d_lanes * 4 + 3 * H_pad * 4
    # Fixed: bf16 weights (worst-case double buffered) + packed biases.
    fixed = 2 * 2 * (D * H_pad + 3 * H_pad * H_pad) + 2 * 8 * H_pad * 4
    budget = int(vmem_limit_bytes * 0.6)
    max_rows = (budget - fixed) // per_row
    max_rows = max(8, (max_rows // 8) * 8)

    tile_N = min(_round_up(N, 8), min(max_rows, 2048))
    tile_N = max(8, (tile_N // 8) * 8)

    bb_cap = max(8, ((max_rows // tile_N) // 8) * 8)
    if B >= 16:
        # Guarantee >= 2 batch blocks so the "parallel" axis can shard across
        # v7x's two TensorCores (harmless on single-TC v5e/v6e).
        block_B = max(8, min(bb_cap, _round_up((B + 1) // 2, 8)))
    else:
        block_B = B if B <= bb_cap else bb_cap
    return block_B, tile_N


def _make_kernel(n_valid, tile_n, needs_mask):
    def kernel(x_ref, w1_ref, w2_ref, w3_ref, w4_ref, b_ref, out_ref):
        k = pl.program_id(1)

        @pl.when(k == 0)
        def _init():
            out_ref[...] = jnp.zeros_like(out_ref)

        bb, tn, d = x_ref.shape
        # f32 -> bf16 cast on the VPU; flatten (bb, tn, d) -> (bb*tn, d) so the
        # MXU sees one large-M matmul (layout-free: tn is a multiple of 8).
        x = x_ref[...].astype(jnp.bfloat16).reshape(bb * tn, d)

        # ---- phi: Linear -> ReLU -> Linear -> ReLU (bf16 MXU, f32 accum) ----
        h = jnp.dot(x, w1_ref[...],
                    preferred_element_type=jnp.float32) + b_ref[0:1, :]
        h = jnp.maximum(h, 0.0)
        h = jnp.dot(h.astype(jnp.bfloat16), w2_ref[...],
                    preferred_element_type=jnp.float32) + b_ref[1:2, :]
        h = jnp.maximum(h, 0.0)

        # ---- permutation-invariant sum-pool over this set tile ------------
        h3 = h.reshape(bb, tn, -1)
        if needs_mask:
            # Zero-padding the set axis is NOT neutral (phi(0)=ReLU(b1)!=0),
            # so mask padded rows before they enter the pooled sum.
            n_idx = jax.lax.broadcasted_iota(jnp.int32, (1, tn, 1), 1) + k * tile_n
            h3 = jnp.where(n_idx < n_valid, h3, 0.0)
        out_ref[...] += jnp.sum(h3, axis=1)   # f32 accumulation in the output block

        # ---- rho: Linear -> ReLU -> Linear, once the pool is complete ------
        @pl.when(k == pl.num_programs(1) - 1)
        def _finalize():
            pooled = out_ref[...]
            r = jnp.dot(pooled.astype(jnp.bfloat16), w3_ref[...],
                        preferred_element_type=jnp.float32) + b_ref[2:3, :]
            r = jnp.maximum(r, 0.0)
            out_ref[...] = jnp.dot(r.astype(jnp.bfloat16), w4_ref[...],
                                   preferred_element_type=jnp.float32) + b_ref[3:4, :]

    return kernel


def deep_set_forward(x, params):
    """x: (B, N, D) float32. params: dict of f32 weights/biases. Returns (B, H) f32."""
    B, N, D = x.shape
    H = params['w1'].shape[1]
    H_pad = _round_up(max(H, _LANE), _LANE)
    hp = H_pad - H

    # Lane-dense padding of the hidden width (zero rows/cols are exactly
    # neutral through ReLU / sum-pool); weights in bf16 for the MXU.
    w1 = jnp.pad(params['w1'], ((0, 0), (0, hp))).astype(jnp.bfloat16)
    w2 = jnp.pad(params['w2'], ((0, hp), (0, hp))).astype(jnp.bfloat16)
    w3 = jnp.pad(params['w3'], ((0, hp), (0, hp))).astype(jnp.bfloat16)
    w4 = jnp.pad(params['w4'], ((0, hp), (0, hp))).astype(jnp.bfloat16)
    # Pack the four bias vectors into one (8, H_pad) f32 block: one DMA, one arg.
    b_all = jnp.zeros((8, H_pad), jnp.float32)
    b_all = b_all.at[0, :H].set(params['b1'].reshape(-1))
    b_all = b_all.at[1, :H].set(params['b2'].reshape(-1))
    b_all = b_all.at[2, :H].set(params['b3'].reshape(-1))
    b_all = b_all.at[3, :H].set(params['b4'].reshape(-1))

    vmem_limit = _device_vmem_limit_bytes()
    block_B, tile_N = _pick_tiles(B, N, D, H_pad, vmem_limit)

    N_pad = _round_up(N, tile_N)
    needs_mask = N_pad != N
    x_in = jnp.pad(x, ((0, 0), (0, N_pad - N), (0, 0))) if needs_mask else x

    grid = (pl.cdiv(B, block_B), N_pad // tile_N)
    kernel = _make_kernel(N, tile_N, needs_mask)

    flops = (2 * B * N_pad * D * H_pad
             + 2 * B * N_pad * H_pad * H_pad
             + 2 * 2 * B * H_pad * H_pad)
    bytes_accessed = (B * N_pad * D * 4                       # f32 activations in
                      + B * H_pad * 4                         # f32 output
                      + (D * H_pad + 3 * H_pad * H_pad) * 2   # bf16 weights
                      + 8 * H_pad * 4)                        # packed biases
    cost = pl.CostEstimate(flops=flops, transcendentals=0,
                           bytes_accessed=bytes_accessed)

    def run(single_buffer_consts):
        def const_spec(shape):
            idx = lambda i, k: (0,) * len(shape)
            if single_buffer_consts:
                # Constant index_map -> never re-DMA'd; single buffering halves
                # the VMEM these weights reserve (most valuable on v7x).
                return pl.BlockSpec(shape, idx, pipeline_mode=pl.Buffered(1))
            return pl.BlockSpec(shape, idx)

        in_specs = [
            pl.BlockSpec((block_B, tile_N, D), lambda i, k: (i, k, 0)),  # x (f32)
            const_spec((D, H_pad)),        # w1
            const_spec((H_pad, H_pad)),    # w2
            const_spec((H_pad, H_pad)),    # w3
            const_spec((H_pad, H_pad)),    # w4
            const_spec((8, H_pad)),        # packed biases
        ]
        out_spec = pl.BlockSpec((block_B, H_pad), lambda i, k: (i, 0))

        return pl.pallas_call(
            kernel,
            out_shape=jax.ShapeDtypeStruct((B, H_pad), jnp.float32),
            grid_spec=pltpu.PrefetchScalarGridSpec(
                num_scalar_prefetch=0,
                grid=grid,
                in_specs=in_specs,
                out_specs=out_spec,
            ),
            compiler_params=pltpu.CompilerParams(
                dimension_semantics=("parallel", "arbitrary"),
                vmem_limit_bytes=vmem_limit,
            ),
            cost_estimate=cost,
        )(x_in, w1, w2, w3, w4, b_all)

    try:
        out_padded = run(True)
    except Exception:
        # JAX build without BlockSpec.pipeline_mode support for pallas_call:
        # fall back to default double-buffered constant operands.
        out_padded = run(False)

    return out_padded[:, :H]


def init_params(key, input_dim, hidden_dim):
    ks = jax.random.split(key, 8)

    def lin(kw, fan_in, fan_out):
        scale = 1.0 / jnp.sqrt(fan_in)
        return jax.random.uniform(kw, (fan_in, fan_out), jnp.float32, -scale, scale)

    return {
        'w1': lin(ks[0], input_dim, hidden_dim),
        'b1': jax.random.uniform(ks[1], (1, hidden_dim), jnp.float32, -0.1, 0.1),
        'w2': lin(ks[2], hidden_dim, hidden_dim),
        'b2': jax.random.uniform(ks[3], (1, hidden_dim), jnp.float32, -0.1, 0.1),
        'w3': lin(ks[4], hidden_dim, hidden_dim),
        'b3': jax.random.uniform(ks[5], (1, hidden_dim), jnp.float32, -0.1, 0.1),
        'w4': lin(ks[6], hidden_dim, hidden_dim),
        'b4': jax.random.uniform(ks[7], (1, hidden_dim), jnp.float32, -0.1, 0.1),
    }


def _reference(x, p):
    # Mirrors the kernel's bf16-matmul / f32-accumulate numerics.
    bf = jnp.bfloat16
    h = jnp.einsum('bnd,dh->bnh', x.astype(bf), p['w1'].astype(bf),
                   preferred_element_type=jnp.float32) + p['b1']
    h = jnp.maximum(h, 0.0)
    h = jnp.einsum('bnh,hk->bnk', h.astype(bf), p['w2'].astype(bf),
                   preferred_element_type=jnp.float32) + p['b2']
    h = jnp.maximum(h, 0.0)
    pooled = jnp.sum(h, axis=1)
    r = jnp.dot(pooled.astype(bf), p['w3'].astype(bf),
                preferred_element_type=jnp.float32) + p['b3']
    r = jnp.maximum(r, 0.0)
    return jnp.dot(r.astype(bf), p['w4'].astype(bf),
                   preferred_element_type=jnp.float32) + p['b4']


if __name__ == "__main__":
    B, N, D, H = 2, 8, 4, 32   # batch, set size, input_dim, hidden_dim

    key = jax.random.PRNGKey(0)
    k_x, k_p = jax.random.split(key)
    x = jax.random.normal(k_x, (B, N, D), jnp.float32)
    params = init_params(k_p, D, H)

    out = deep_set_forward(x, params)
    out = jax.block_until_ready(out)

    ref = _reference(x, params)
    assert out.shape == (B, H), out.shape
    err = float(jnp.max(jnp.abs(out - ref)))
    assert jnp.allclose(out, ref, atol=2e-2, rtol=2e-2), err

    print("KERNEL_OK")
</pallas_src>

<mosaic_0001>
module attributes {stable_mosaic.version = 11 : i64} {
  func.func @kernel(%arg0: i32, %arg1: i32, %arg2: memref<2x8x4xf32, #tpu.memory_space<vmem>>, %arg3: memref<4x128xbf16, #tpu.memory_space<vmem>>, %arg4: memref<128x128xbf16, #tpu.memory_space<vmem>>, %arg5: memref<128x128xbf16, #tpu.memory_space<vmem>>, %arg6: memref<128x128xbf16, #tpu.memory_space<vmem>>, %arg7: memref<8x128xf32, #tpu.memory_space<vmem>>, %arg8: memref<2x128xf32, #tpu.memory_space<vmem>>) attributes {dimension_semantics = [#tpu.dimension_semantics<parallel>, #tpu.dimension_semantics<arbitrary>], iteration_bounds = array<i64: 1, 1>, scalar_prefetch = 0 : i64, scratch_operands = 0 : i64, tpu.core_type = #tpu.core_type<tc>, window_params = [{transform_indices = @transform_0, window_bounds = array<i64: 2, 8, 4>}, {pipeline_mode = #tpu.pipeline_mode<synchronous>, transform_indices = @transform_1, window_bounds = array<i64: 4, 128>}, {pipeline_mode = #tpu.pipeline_mode<synchronous>, transform_indices = @transform_2, window_bounds = array<i64: 128, 128>}, {pipeline_mode = #tpu.pipeline_mode<synchronous>, transform_indices = @transform_3, window_bounds = array<i64: 128, 128>}, {pipeline_mode = #tpu.pipeline_mode<synchronous>, transform_indices = @transform_4, window_bounds = array<i64: 128, 128>}, {pipeline_mode = #tpu.pipeline_mode<synchronous>, transform_indices = @transform_5, window_bounds = array<i64: 8, 128>}, {transform_indices = @transform_6, window_bounds = array<i64: 2, 128>}]} {
    %c0_i32 = arith.constant 0 : i32
    %0 = arith.cmpi eq, %arg1, %c0_i32 : i32
    %1 = arith.extui %0 : i1 to i32
    %c0_i32_0 = arith.constant 0 : i32
    %2 = arith.cmpi ne, %1, %c0_i32_0 : i32
    scf.if %2 {
      %cst_20 = arith.constant 0.000000e+00 : f32
      %29 = vector.broadcast %cst_20 : f32 to vector<2x128xf32>
      %c0_21 = arith.constant 0 : index
      %c0_22 = arith.constant 0 : index
      %30 = vector.load %arg8[%c0_21, %c0_22] : memref<2x128xf32, #tpu.memory_space<vmem>>, vector<2x128xf32>
      tpu.vector_store %arg8[%c0_21, %c0_22], %29 {strides = array<i32>} : memref<2x128xf32, #tpu.memory_space<vmem>>, vector<2x128xf32>,
    } else {
    }
    %c0 = arith.constant 0 : index
    %c0_1 = arith.constant 0 : index
    %c0_2 = arith.constant 0 : index
    %3 = vector.load %arg2[%c0, %c0_1, %c0_2] : memref<2x8x4xf32, #tpu.memory_space<vmem>>, vector<2x8x4xf32>
    %4 = arith.truncf %3 : vector<2x8x4xf32> to vector<2x8x4xbf16>
    %5 = vector.shape_cast %4 : vector<2x8x4xbf16> to vector<16x4xbf16>
    %c0_3 = arith.constant 0 : index
    %c0_4 = arith.constant 0 : index
    %6 = vector.load %arg3[%c0_3, %c0_4] : memref<4x128xbf16, #tpu.memory_space<vmem>>, vector<4x128xbf16>
    %cst = arith.constant dense<0.000000e+00> : vector<16x128xf32>
    %7 = tpu.matmul %5, %6, %cst {dimension_numbers = #tpu.dot_dimension_numbers<[1], [0], [0], [1], [0, 0, 1, 1], [], []>} : vector<16x4xbf16>, vector<4x128xbf16>, vector<16x128xf32> -> vector<16x128xf32>
    %c0_5 = arith.constant 0 : index
    %c0_6 = arith.constant 0 : index
    %8 = vector.load %arg7[%c0_5, %c0_6] : memref<8x128xf32, #tpu.memory_space<vmem>>, vector<1x128xf32>
    %9 = vector.broadcast %8 : vector<1x128xf32> to vector<16x128xf32>
    %10 = arith.addf %7, %9 : vector<16x128xf32>
    %cst_7 = arith.constant 0.000000e+00 : f32
    %11 = vector.broadcast %cst_7 : f32 to vector<16x128xf32>
    %12 = arith.maximumf %10, %11 : vector<16x128xf32>
    %13 = arith.truncf %12 : vector<16x128xf32> to vector<16x128xbf16>
    %c0_8 = arith.constant 0 : index
    %c0_9 = arith.constant 0 : index
    %14 = vector.load %arg4[%c0_8, %c0_9] : memref<128x128xbf16, #tpu.memory_space<vmem>>, vector<128x128xbf16>
    %cst_10 = arith.constant dense<0.000000e+00> : vector<16x128xf32>
    %15 = tpu.matmul %13, %14, %cst_10 {dimension_numbers = #tpu.dot_dimension_numbers<[1], [0], [0], [1], [0, 0, 1, 1], [], []>} : vector<16x128xbf16>, vector<128x128xbf16>, vector<16x128xf32> -> vector<16x128xf32>
    %c1 = arith.constant 1 : index
    %c0_11 = arith.constant 0 : index
    %16 = vector.load %arg7[%c1, %c0_11] : memref<8x128xf32, #tpu.memory_space<vmem>>, vector<1x128xf32>
    %17 = vector.broadcast %16 : vector<1x128xf32> to vector<16x128xf32>
    %18 = arith.addf %15, %17 : vector<16x128xf32>
    %cst_12 = arith.constant 0.000000e+00 : f32
    %19 = vector.broadcast %cst_12 : f32 to vector<16x128xf32>
    %20 = arith.maximumf %18, %19 : vector<16x128xf32>
    %21 = vector.shape_cast %20 : vector<16x128xf32> to vector<2x8x128xf32>
    %c0_13 = arith.constant 0 : index
    %c0_14 = arith.constant 0 : index
    %22 = vector.load %arg8[%c0_13, %c0_14] : memref<2x128xf32, #tpu.memory_space<vmem>>, vector<2x128xf32>
    %cst_15 = arith.constant dense<0.000000e+00> : vector<2x128xf32>
    %23 = vector.multi_reduction <add>, %21, %cst_15 [1] : vector<2x8x128xf32> to vector<2x128xf32>
    %24 = arith.addf %22, %23 : vector<2x128xf32>
    %c0_16 = arith.constant 0 : index
    %c0_17 = arith.constant 0 : index
    %25 = vector.load %arg8[%c0_16, %c0_17] : memref<2x128xf32, #tpu.memory_space<vmem>>, vector<2x128xf32>
    tpu.vector_store %arg8[%c0_16, %c0_17], %24 {strides = array<i32>} : memref<2x128xf32, #tpu.memory_space<vmem>>, vector<2x128xf32>,
    %c0_i32_18 = arith.constant 0 : i32
    %26 = arith.cmpi eq, %arg1, %c0_i32_18 : i32
    %27 = arith.extui %26 : i1 to i32
    %c0_i32_19 = arith.constant 0 : i32
    %28 = arith.cmpi ne, %27, %c0_i32_19 : i32
    scf.if %28 {
      %c0_20 = arith.constant 0 : index
      %c0_21 = arith.constant 0 : index
      %29 = vector.load %arg8[%c0_20, %c0_21] : memref<2x128xf32, #tpu.memory_space<vmem>>, vector<2x128xf32>
      %30 = arith.truncf %29 : vector<2x128xf32> to vector<2x128xbf16>
      %c0_22 = arith.constant 0 : index
      %c0_23 = arith.constant 0 : index
      %31 = vector.load %arg5[%c0_22, %c0_23] : memref<128x128xbf16, #tpu.memory_space<vmem>>, vector<128x128xbf16>
      %cst_24 = arith.constant dense<0.000000e+00> : vector<2x128xf32>
      %32 = tpu.matmul %30, %31, %cst_24 {dimension_numbers = #tpu.dot_dimension_numbers<[1], [0], [0], [1], [0, 0, 1, 1], [], []>} : vector<2x128xbf16>, vector<128x128xbf16>, vector<2x128xf32> -> vector<2x128xf32>
      %c2 = arith.constant 2 : index
      %c0_25 = arith.constant 0 : index
      %33 = vector.load %arg7[%c2, %c0_25] : memref<8x128xf32, #tpu.memory_space<vmem>>, vector<1x128xf32>
      %34 = vector.broadcast %33 : vector<1x128xf32> to vector<2x128xf32>
      %35 = arith.addf %32, %34 : vector<2x128xf32>
      %cst_26 = arith.constant 0.000000e+00 : f32
      %36 = vector.broadcast %cst_26 : f32 to vector<2x128xf32>
      %37 = arith.maximumf %35, %36 : vector<2x128xf32>
      %38 = arith.truncf %37 : vector<2x128xf32> to vector<2x128xbf16>
      %c0_27 = arith.constant 0 : index
      %c0_28 = arith.constant 0 : index
      %39 = vector.load %arg6[%c0_27, %c0_28] : memref<128x128xbf16, #tpu.memory_space<vmem>>, vector<128x128xbf16>
      %cst_29 = arith.constant dense<0.000000e+00> : vector<2x128xf32>
      %40 = tpu.matmul %38, %39, %cst_29 {dimension_numbers = #tpu.dot_dimension_numbers<[1], [0], [0], [1], [0, 0, 1, 1], [], []>} : vector<2x128xbf16>, vector<128x128xbf16>, vector<2x128xf32> -> vector<2x128xf32>
      %c3 = arith.constant 3 : index
      %c0_30 = arith.constant 0 : index
      %41 = vector.load %arg7[%c3, %c0_30] : memref<8x128xf32, #tpu.memory_space<vmem>>, vector<1x128xf32>
      %42 = vector.broadcast %41 : vector<1x128xf32> to vector<2x128xf32>
      %43 = arith.addf %40, %42 : vector<2x128xf32>
      %c0_31 = arith.constant 0 : index
      %c0_32 = arith.constant 0 : index
      %44 = vector.load %arg8[%c0_31, %c0_32] : memref<2x128xf32, #tpu.memory_space<vmem>>, vector<2x128xf32>
      tpu.vector_store %arg8[%c0_31, %c0_32], %43 {strides = array<i32>} : memref<2x128xf32, #tpu.memory_space<vmem>>, vector<2x128xf32>,
    } else {
    }
    return
  }
  func.func @transform_0(%arg0: i32, %arg1: i32) -> (i32, i32, i32) {
    %c0_i32 = arith.constant 0 : i32
    %c0_i32_0 = arith.constant 0 : i32
    return %arg0, %arg1, %c0_i32 : i32, i32, i32
  }
  func.func @transform_1(%arg0: i32, %arg1: i32) -> (i32, i32) {
    %c0_i32 = arith.constant 0 : i32
    %c0_i32_0 = arith.constant 0 : i32
    %c0_i32_1 = arith.constant 0 : i32
    return %c0_i32, %c0_i32_0 : i32, i32
  }
  func.func @transform_2(%arg0: i32, %arg1: i32) -> (i32, i32) {
    %c0_i32 = arith.constant 0 : i32
    %c0_i32_0 = arith.constant 0 : i32
    %c0_i32_1 = arith.constant 0 : i32
    return %c0_i32, %c0_i32_0 : i32, i32
  }
  func.func @transform_3(%arg0: i32, %arg1: i32) -> (i32, i32) {
    %c0_i32 = arith.constant 0 : i32
    %c0_i32_0 = arith.constant 0 : i32
    %c0_i32_1 = arith.constant 0 : i32
    return %c0_i32, %c0_i32_0 : i32, i32
  }
  func.func @transform_4(%arg0: i32, %arg1: i32) -> (i32, i32) {
    %c0_i32 = arith.constant 0 : i32
    %c0_i32_0 = arith.constant 0 : i32
    %c0_i32_1 = arith.constant 0 : i32
    return %c0_i32, %c0_i32_0 : i32, i32
  }
  func.func @transform_5(%arg0: i32, %arg1: i32) -> (i32, i32) {
    %c0_i32 = arith.constant 0 : i32
    %c0_i32_0 = arith.constant 0 : i32
    %c0_i32_1 = arith.constant 0 : i32
    return %c0_i32, %c0_i32_0 : i32, i32
  }
  func.func @transform_6(%arg0: i32, %arg1: i32) -> (i32, i32) {
    %c0_i32 = arith.constant 0 : i32
    %c0_i32_0 = arith.constant 0 : i32
    return %arg0, %c0_i32 : i32, i32
  }
}

module attributes {stable_mosaic.version = 11 : i64} {
  func.func @kernel(%arg0: i32, %arg1: i32, %arg2: memref<2x8x4xf32, #tpu.memory_space<vmem>>, %arg3: memref<4x128xbf16, #tpu.memory_space<vmem>>, %arg4: memref<128x128xbf16, #tpu.memory_space<vmem>>, %arg5: memref<128x128xbf16, #tpu.memory_space<vmem>>, %arg6: memref<128x128xbf16, #tpu.memory_space<vmem>>, %arg7: memref<8x128xf32, #tpu.memory_space<vmem>>, %arg8: memref<2x128xf32, #tpu.memory_space<vmem>>) attributes {dimension_semantics = [#tpu.dimension_semantics<parallel>, #tpu.dimension_semantics<arbitrary>], iteration_bounds = array<i64: 1, 1>, scalar_prefetch = 0 : i64, scratch_operands = 0 : i64, tpu.core_type = #tpu.core_type<tc>, window_params = [{transform_indices = @transform_0, window_bounds = array<i64: 2, 8, 4>}, {pipeline_mode = #tpu.pipeline_mode<synchronous>, transform_indices = @transform_1, window_bounds = array<i64: 4, 128>}, {pipeline_mode = #tpu.pipeline_mode<synchronous>, transform_indices = @transform_2, window_bounds = array<i64: 128, 128>}, {pipeline_mode = #tpu.pipeline_mode<synchronous>, transform_indices = @transform_3, window_bounds = array<i64: 128, 128>}, {pipeline_mode = #tpu.pipeline_mode<synchronous>, transform_indices = @transform_4, window_bounds = array<i64: 128, 128>}, {pipeline_mode = #tpu.pipeline_mode<synchronous>, transform_indices = @transform_5, window_bounds = array<i64: 8, 128>}, {transform_indices = @transform_6, window_bounds = array<i64: 2, 128>}]} {
    %c0_i32 = arith.constant 0 : i32
    %0 = arith.cmpi eq, %arg1, %c0_i32 : i32
    %1 = arith.extui %0 : i1 to i32
    %c0_i32_0 = arith.constant 0 : i32
    %2 = arith.cmpi ne, %1, %c0_i32_0 : i32
    scf.if %2 {
      %cst_20 = arith.constant 0.000000e+00 : f32
      %29 = vector.broadcast %cst_20 : f32 to vector<2x128xf32>
      %c0_21 = arith.constant 0 : index
      %c0_22 = arith.constant 0 : index
      %30 = vector.load %arg8[%c0_21, %c0_22] : memref<2x128xf32, #tpu.memory_space<vmem>>, vector<2x128xf32>
      tpu.vector_store %arg8[%c0_21, %c0_22], %29 {strides = array<i32>} : memref<2x128xf32, #tpu.memory_space<vmem>>, vector<2x128xf32>,
    } else {
    }
    %c0 = arith.constant 0 : index
    %c0_1 = arith.constant 0 : index
    %c0_2 = arith.constant 0 : index
    %3 = vector.load %arg2[%c0, %c0_1, %c0_2] : memref<2x8x4xf32, #tpu.memory_space<vmem>>, vector<2x8x4xf32>
    %4 = arith.truncf %3 : vector<2x8x4xf32> to vector<2x8x4xbf16>
    %5 = vector.shape_cast %4 : vector<2x8x4xbf16> to vector<16x4xbf16>
    %c0_3 = arith.constant 0 : index
    %c0_4 = arith.constant 0 : index
    %6 = vector.load %arg3[%c0_3, %c0_4] : memref<4x128xbf16, #tpu.memory_space<vmem>>, vector<4x128xbf16>
    %cst = arith.constant dense<0.000000e+00> : vector<16x128xf32>
    %7 = tpu.matmul %5, %6, %cst {dimension_numbers = #tpu.dot_dimension_numbers<[1], [0], [0], [1], [0, 0, 1, 1], [], []>} : vector<16x4xbf16>, vector<4x128xbf16>, vector<16x128xf32> -> vector<16x128xf32>
    %c0_5 = arith.constant 0 : index
    %c0_6 = arith.constant 0 : index
    %8 = vector.load %arg7[%c0_5, %c0_6] : memref<8x128xf32, #tpu.memory_space<vmem>>, vector<1x128xf32>
    %9 = vector.broadcast %8 : vector<1x128xf32> to vector<16x128xf32>
    %10 = arith.addf %7, %9 : vector<16x128xf32>
    %cst_7 = arith.constant 0.000000e+00 : f32
    %11 = vector.broadcast %cst_7 : f32 to vector<16x128xf32>
    %12 = arith.maximumf %10, %11 : vector<16x128xf32>
    %13 = arith.truncf %12 : vector<16x128xf32> to vector<16x128xbf16>
    %c0_8 = arith.constant 0 : index
    %c0_9 = arith.constant 0 : index
    %14 = vector.load %arg4[%c0_8, %c0_9] : memref<128x128xbf16, #tpu.memory_space<vmem>>, vector<128x128xbf16>
    %cst_10 = arith.constant dense<0.000000e+00> : vector<16x128xf32>
    %15 = tpu.matmul %13, %14, %cst_10 {dimension_numbers = #tpu.dot_dimension_numbers<[1], [0], [0], [1], [0, 0, 1, 1], [], []>} : vector<16x128xbf16>, vector<128x128xbf16>, vector<16x128xf32> -> vector<16x128xf32>
    %c1 = arith.constant 1 : index
    %c0_11 = arith.constant 0 : index
    %16 = vector.load %arg7[%c1, %c0_11] : memref<8x128xf32, #tpu.memory_space<vmem>>, vector<1x128xf32>
    %17 = vector.broadcast %16 : vector<1x128xf32> to vector<16x128xf32>
    %18 = arith.addf %15, %17 : vector<16x128xf32>
    %cst_12 = arith.constant 0.000000e+00 : f32
    %19 = vector.broadcast %cst_12 : f32 to vector<16x128xf32>
    %20 = arith.maximumf %18, %19 : vector<16x128xf32>
    %21 = vector.shape_cast %20 : vector<16x128xf32> to vector<2x8x128xf32>
    %c0_13 = arith.constant 0 : index
    %c0_14 = arith.constant 0 : index
    %22 = vector.load %arg8[%c0_13, %c0_14] : memref<2x128xf32, #tpu.memory_space<vmem>>, vector<2x128xf32>
    %cst_15 = arith.constant dense<0.000000e+00> : vector<2x128xf32>
    %23 = vector.multi_reduction <add>, %21, %cst_15 [1] : vector<2x8x128xf32> to vector<2x128xf32>
    %24 = arith.addf %22, %23 : vector<2x128xf32>
    %c0_16 = arith.constant 0 : index
    %c0_17 = arith.constant 0 : index
    %25 = vector.load %arg8[%c0_16, %c0_17] : memref<2x128xf32, #tpu.memory_space<vmem>>, vector<2x128xf32>
    tpu.vector_store %arg8[%c0_16, %c0_17], %24 {strides = array<i32>} : memref<2x128xf32, #tpu.memory_space<vmem>>, vector<2x128xf32>,
    %c0_i32_18 = arith.constant 0 : i32
    %26 = arith.cmpi eq, %arg1, %c0_i32_18 : i32
    %27 = arith.extui %26 : i1 to i32
    %c0_i32_19 = arith.constant 0 : i32
    %28 = arith.cmpi ne, %27, %c0_i32_19 : i32
    scf.if %28 {
      %c0_20 = arith.constant 0 : index
      %c0_21 = arith.constant 0 : index
      %29 = vector.load %arg8[%c0_20, %c0_21] : memref<2x128xf32, #tpu.memory_space<vmem>>, vector<2x128xf32>
      %30 = arith.truncf %29 : vector<2x128xf32> to vector<2x128xbf16>
      %c0_22 = arith.constant 0 : index
      %c0_23 = arith.constant 0 : index
      %31 = vector.load %arg5[%c0_22, %c0_23] : memref<128x128xbf16, #tpu.memory_space<vmem>>, vector<128x128xbf16>
      %cst_24 = arith.constant dense<0.000000e+00> : vector<2x128xf32>
      %32 = tpu.matmul %30, %31, %cst_24 {dimension_numbers = #tpu.dot_dimension_numbers<[1], [0], [0], [1], [0, 0, 1, 1], [], []>} : vector<2x128xbf16>, vector<128x128xbf16>, vector<2x128xf32> -> vector<2x128xf32>
      %c2 = arith.constant 2 : index
      %c0_25 = arith.constant 0 : index
      %33 = vector.load %arg7[%c2, %c0_25] : memref<8x128xf32, #tpu.memory_space<vmem>>, vector<1x128xf32>
      %34 = vector.broadcast %33 : vector<1x128xf32> to vector<2x128xf32>
      %35 = arith.addf %32, %34 : vector<2x128xf32>
      %cst_26 = arith.constant 0.000000e+00 : f32
      %36 = vector.broadcast %cst_26 : f32 to vector<2x128xf32>
      %37 = arith.maximumf %35, %36 : vector<2x128xf32>
      %38 = arith.truncf %37 : vector<2x128xf32> to vector<2x128xbf16>
      %c0_27 = arith.constant 0 : index
      %c0_28 = arith.constant 0 : index
      %39 = vector.load %arg6[%c0_27, %c0_28] : memref<128x128xbf16, #tpu.memory_space<vmem>>, vector<128x128xbf16>
      %cst_29 = arith.constant dense<0.000000e+00> : vector<2x128xf32>
      %40 = tpu.matmul %38, %39, %cst_29 {dimension_numbers = #tpu.dot_dimension_numbers<[1], [0], [0], [1], [0, 0, 1, 1], [], []>} : vector<2x128xbf16>, vector<128x128xbf16>, vector<2x128xf32> -> vector<2x128xf32>
      %c3 = arith.constant 3 : index
      %c0_30 = arith.constant 0 : index
      %41 = vector.load %arg7[%c3, %c0_30] : memref<8x128xf32, #tpu.memory_space<vmem>>, vector<1x128xf32>
      %42 = vector.broadcast %41 : vector<1x128xf32> to vector<2x128xf32>
      %43 = arith.addf %40, %42 : vector<2x128xf32>
      %c0_31 = arith.constant 0 : index
      %c0_32 = arith.constant 0 : index
      %44 = vector.load %arg8[%c0_31, %c0_32] : memref<2x128xf32, #tpu.memory_space<vmem>>, vector<2x128xf32>
      tpu.vector_store %arg8[%c0_31, %c0_32], %43 {strides = array<i32>} : memref<2x128xf32, #tpu.memory_space<vmem>>, vector<2x128xf32>,
    } else {
    }
    return
  }
  func.func @transform_0(%arg0: i32, %arg1: i32) -> (i32, i32, i32) {
    %c0_i32 = arith.constant 0 : i32
    %c0_i32_0 = arith.constant 0 : i32
    return %arg0, %arg1, %c0_i32 : i32, i32, i32
  }
  func.func @transform_1(%arg0: i32, %arg1: i32) -> (i32, i32) {
    %c0_i32 = arith.constant 0 : i32
    %c0_i32_0 = arith.constant 0 : i32
    %c0_i32_1 = arith.constant 0 : i32
    return %c0_i32, %c0_i32_0 : i32, i32
  }
  func.func @transform_2(%arg0: i32, %arg1: i32) -> (i32, i32) {
    %c0_i32 = arith.constant 0 : i32
    %c0_i32_0 = arith.constant 0 : i32
    %c0_i32_1 = arith.constant 0 : i32
    return %c0_i32, %c0_i32_0 : i32, i32
  }
  func.func @transform_3(%arg0: i32, %arg1: i32) -> (i32, i32) {
    %c0_i32 = arith.constant 0 : i32
    %c0_i32_0 = arith.constant 0 : i32
    %c0_i32_1 = arith.constant 0 : i32
    return %c0_i32, %c0_i32_0 : i32, i32
  }
  func.func @transform_4(%arg0: i32, %arg1: i32) -> (i32, i32) {
    %c0_i32 = arith.constant 0 : i32
    %c0_i32_0 = arith.constant 0 : i32
    %c0_i32_1 = arith.constant 0 : i32
    return %c0_i32, %c0_i32_0 : i32, i32
  }
  func.func @transform_5(%arg0: i32, %arg1: i32) -> (i32, i32) {
    %c0_i32 = arith.constant 0 : i32
    %c0_i32_0 = arith.constant 0 : i32
    %c0_i32_1 = arith.constant 0 : i32
    return %c0_i32, %c0_i32_0 : i32, i32
  }
  func.func @transform_6(%arg0: i32, %arg1: i32) -> (i32, i32) {
    %c0_i32 = arith.constant 0 : i32
    %c0_i32_0 = arith.constant 0 : i32
    return %arg0, %c0_i32 : i32, i32
  }
}

</mosaic_0001>

<llo_original>
// kernel: tpu_custom_call.1
$region0: #{tpu_custom_call.1}
  #allocation0 [shape = 'u32[]', space=smem, size = 0x4, offset = 0x4, fixed_abs, tag = 'smem constant byte address 0x4 - core index']
  #allocation1 [shape = 'u32[144,128]{1,0:T(1,128)}', space=vmem, size = 0x12000, scoped, tag = 'internal scratch']
  %s0 = inlined_call_operand.hbm [shape: f32[2,8,4], index: 0, kind: input, shape index: {}]
  %s1 = inlined_call_operand.hbm [shape: bf16[4,128], index: 1, kind: input, shape index: {}]
  %s2 = inlined_call_operand.hbm [shape: bf16[128,128], index: 2, kind: input, shape index: {}]
  %s3 = inlined_call_operand.hbm [shape: bf16[128,128], index: 3, kind: input, shape index: {}]
  %s4 = inlined_call_operand.hbm [shape: bf16[128,128], index: 4, kind: input, shape index: {}]
  %s5 = inlined_call_operand.hbm [shape: f32[8,128], index: 5, kind: input, shape index: {}]
  %s6 = inlined_call_operand.hbm [shape: f32[2,128], index: 6, kind: output, shape index: {}]
  %s7 = sld [smem:[#allocation0]]
  $region66: #{tpu_custom_call.1} parent=0
    _
  %s9 = ssub.s32 1, %s7
  %s10 = scalar_select 0, %s9, %s7
  $region1: #{tpu_custom_call.1} parent=0
    #allocation2 [shape = 'u8[8192]{0}', space=vmem, size = 0x2000, scoped, tag = 'input window, operand 0, single buffered']
    #allocation3 [shape = 's32[1]{0}', space=sflag, size = 0x4, scoped, tag = 'scoped memory for tpu_custom_call.1']
    #allocation4 [shape = 's32[1]{0}', space=sflag, size = 0x4, scoped, tag = 'scoped memory for tpu_custom_call.1']
    #allocation5 [shape = 'u8[1024]{0}', space=vmem, size = 0x400, scoped, tag = 'input window, operand 1, single buffered']
    #allocation6 [shape = 's32[1]{0}', space=sflag, size = 0x4, scoped, tag = 'scoped memory for tpu_custom_call.1']
    #allocation7 [shape = 'u8[32768]{0}', space=vmem, size = 0x8000, scoped, tag = 'input window, operand 2, single buffered']
    #allocation8 [shape = 'u8[32768]{0}', space=vmem, size = 0x8000, scoped, tag = 'input window, operand 3, single buffered']
    #allocation9 [shape = 's32[1]{0}', space=sflag, size = 0x4, scoped, tag = 'scoped memory for tpu_custom_call.1']
    #allocation10 [shape = 'u8[32768]{0}', space=vmem, size = 0x8000, scoped, tag = 'input window, operand 4, single buffered']
    #allocation11 [shape = 'u8[4096]{0}', space=vmem, size = 0x1000, scoped, tag = 'input window, operand 5, single buffered']
    #allocation12 [shape = 's32[1]{0}', space=sflag, size = 0x4, scoped, tag = 'scoped memory for tpu_custom_call.1']
    #allocation13 [shape = 'u8[1024]{0}', space=vmem, size = 0x400, scoped, tag = 'output window, operand 0, single buffered']
    %11 = vsyncpa [#allocation3], 0
    %12 = vsyncpa [#allocation6], 0
    %13 = vsyncpa [#allocation9], 0
    %14 = vsyncpa [#allocation12], 0
    %15 = vsyncpa [#allocation4], 0
    // Predicated region
    $region2: #{tpu_custom_call.1} parent=1 // pred_check
      _
    $region3: #{tpu_custom_call.1} parent=1 // pred_check_branch
      %17 = sbr.rel (0) target = $region5
    $region4: #{tpu_custom_call.1} parent=1 // pred_region
      %s19 = ssub.s32 256, 256
      %20 = vsyncadd [#allocation3], %s19
      %s21 = sshll.u32 [#allocation2], 4
      %s22 = int_to_ptr.vmem [resolvable:$true] %s21
      %27 = dma.hbm_to_vmem [thread:$0]  %s0, 256, %s22, [#allocation3], 128, 128, 8
    $region5: #{tpu_custom_call.1} parent=1 // pred_fallthru
      _
    // Predicated region
    $region6: #{tpu_custom_call.1} parent=1 // pred_check
      _
    $region7: #{tpu_custom_call.1} parent=1 // pred_check_branch
      %29 = sbr.rel (0) target = $region9
    $region8: #{tpu_custom_call.1} parent=1 // pred_region
      %s31 = ssub.s32 32, 32
      %32 = vsyncadd [#allocation6], %s31
      %s34 = sshll.u32 [#allocation5], 4
      %s35 = int_to_ptr.vmem [resolvable:$true] %s34
      %37 = dma.hbm_to_vmem [thread:$0]  %s1, 32, %s35, [#allocation6]
    $region9: #{tpu_custom_call.1} parent=1 // pred_fallthru
      _
    // Predicated region
    $region10: #{tpu_custom_call.1} parent=1 // pred_check
      _
    $region11: #{tpu_custom_call.1} parent=1 // pred_check_branch
      %39 = sbr.rel (0) target = $region13
    $region12: #{tpu_custom_call.1} parent=1 // pred_region
      %s41 = ssub.s32 1024, 1024
      %42 = vsyncadd [#allocation6], %s41
      %s43 = sshll.u32 [#allocation7], 4
      %s44 = int_to_ptr.vmem [resolvable:$true] %s43
      %49 = dma.hbm_to_vmem [thread:$0]  %s2, 1024, %s44, [#allocation6], 64, 64, 4
    $region13: #{tpu_custom_call.1} parent=1 // pred_fallthru
      _
    // Predicated region
    $region14: #{tpu_custom_call.1} parent=1 // pred_check
      _
    $region15: #{tpu_custom_call.1} parent=1 // pred_check_branch
      %51 = sbr.rel (0) target = $region17
    $region16: #{tpu_custom_call.1} parent=1 // pred_region
      %s53 = ssub.s32 1024, 1024
      %54 = vsyncadd [#allocation9], %s53
      %s55 = sshll.u32 [#allocation8], 4
      %s56 = int_to_ptr.vmem [resolvable:$true] %s55
      %61 = dma.hbm_to_vmem [thread:$0]  %s3, 1024, %s56, [#allocation9], 64, 64, 4
    $region17: #{tpu_custom_call.1} parent=1 // pred_fallthru
      _
    // Predicated region
    $region18: #{tpu_custom_call.1} parent=1 // pred_check
      _
    $region19: #{tpu_custom_call.1} parent=1 // pred_check_branch
      %63 = sbr.rel (0) target = $region21
    $region20: #{tpu_custom_call.1} parent=1 // pred_region
      %s65 = ssub.s32 1024, 1024
      %66 = vsyncadd [#allocation9], %s65
      %s67 = sshll.u32 [#allocation10], 4
      %s68 = int_to_ptr.vmem [resolvable:$true] %s67
      %73 = dma.hbm_to_vmem [thread:$0]  %s4, 1024, %s68, [#allocation9], 64, 64, 4
    $region21: #{tpu_custom_call.1} parent=1 // pred_fallthru
      _
    // Predicated region
    $region22: #{tpu_custom_call.1} parent=1 // pred_check
      _
    $region23: #{tpu_custom_call.1} parent=1 // pred_check_branch
      %75 = sbr.rel (0) target = $region25
    $region24: #{tpu_custom_call.1} parent=1 // pred_region
      %s77 = ssub.s32 128, 128
      %78 = vsyncadd [#allocation12], %s77
      %s80 = sshll.u32 [#allocation11], 4
      %s81 = int_to_ptr.vmem [resolvable:$true] %s80
      %83 = dma.hbm_to_vmem [thread:$0]  %s5, 128, %s81, [#allocation12]
    $region25: #{tpu_custom_call.1} parent=1 // pred_fallthru
      _
    // Predicated region
    $region26: #{tpu_custom_call.1} parent=1 // pred_check
      _
    $region27: #{tpu_custom_call.1} parent=1 // pred_check_branch
      %85 = sbr.rel (0) target = $region29
    $region28: #{tpu_custom_call.1} parent=1 // pred_region
      %86 = dma.done [#allocation3], 256
    $region29: #{tpu_custom_call.1} parent=1 // pred_fallthru
      _
    // Predicated region
    $region30: #{tpu_custom_call.1} parent=1 // pred_check
      _
    $region31: #{tpu_custom_call.1} parent=1 // pred_check_branch
      %88 = sbr.rel (0) target = $region33
    $region32: #{tpu_custom_call.1} parent=1 // pred_region
      %89 = dma.done [#allocation6], 32
    $region33: #{tpu_custom_call.1} parent=1 // pred_fallthru
      _
    // Predicated region
    $region34: #{tpu_custom_call.1} parent=1 // pred_check
      _
    $region35: #{tpu_custom_call.1} parent=1 // pred_check_branch
      %91 = sbr.rel (0) target = $region37
    $region36: #{tpu_custom_call.1} parent=1 // pred_region
      %92 = dma.done [#allocation6], 1024
    $region37: #{tpu_custom_call.1} parent=1 // pred_fallthru
      _
    // Predicated region
    $region38: #{tpu_custom_call.1} parent=1 // pred_check
      _
    $region39: #{tpu_custom_call.1} parent=1 // pred_check_branch
      %94 = sbr.rel (0) target = $region41
    $region40: #{tpu_custom_call.1} parent=1 // pred_region
      %95 = dma.done [#allocation9], 1024
    $region41: #{tpu_custom_call.1} parent=1 // pred_fallthru
      _
    // Predicated region
    $region42: #{tpu_custom_call.1} parent=1 // pred_check
      _
    $region43: #{tpu_custom_call.1} parent=1 // pred_check_branch
      %97 = sbr.rel (0) target = $region45
    $region44: #{tpu_custom_call.1} parent=1 // pred_region
      %98 = dma.done [#allocation9], 1024
    $region45: #{tpu_custom_call.1} parent=1 // pred_fallthru
      _
    // Predicated region
    $region46: #{tpu_custom_call.1} parent=1 // pred_check
      _
    $region47: #{tpu_custom_call.1} parent=1 // pred_check_branch
      %100 = sbr.rel (0) target = $region49
    $region48: #{tpu_custom_call.1} parent=1 // pred_region
      %101 = dma.done [#allocation12], 128
    $region49: #{tpu_custom_call.1} parent=1 // pred_fallthru
      _
    %p103 = scmp.eq.s32.totalorder 0, 0
    // Predicated region
    $region50: #{tpu_custom_call.1} parent=1 // pred_check
      %p104 = pneg %p103
    $region51: #{tpu_custom_call.1} parent=1 // pred_check_branch
      %106 = sbr.rel (%p104) target = $region53
    $region52: #{tpu_custom_call.1} parent=1 // pred_region
      %107 = vst [vmem:[#allocation13] sm:$0x3] 0.0
    $region53: #{tpu_custom_call.1} parent=1 // pred_fallthru
      _
    %v108 = vld [vmem:[#allocation2] sm:$0xff]
    %v109 = vld [vmem:[#allocation2 + $0x8] sm:$0xff]
    %v110 = vpack.c.bf16 %v108, %v108
    %v111 = vpack.c.bf16 %v109, %v109
    %v112 = vld [vmem:[#allocation5] sm:$0x3]
    %v113 = vld [vmem:[#allocation11] sm:$0x1]
    %v114 = vlaneseq
    %v115 = vshrl.u32 %v114, 7
    %v116 = vsub.s32 0, %v115
    %v117 = vrot.slane %v113, %v116
    %v120 = vunpack.c.l.b16 %v110
    %v121 = vunpack.c.l.b16 %v111
    %v122 = vpack.c.b16 %v121, %v120
    %vm123 = vcmask 31744
    %v125 = vsel %vm123, %v122, 0
    %vm127 = vcmask 1041408
    %v129 = vsel %vm127, %v112, 0
    %131 = vmatprep.subr.bf16.mxu0 0
    %132 = vmatpush1.bf16.msra.mxu0 %v129
    %133 = vmatprep.subr.bf16.mxu0 0
    %134 = vmatpush1.bf16.msra.mxu0 0
    %135 = vmatprep.subr.bf16.mxu0 0
    %136 = vmatpush1.bf16.msra.mxu0 0
    %137 = vmatprep.subr.bf16.mxu0 0
    %138 = vmatpush1.bf16.msra.mxu0 0
    %139 = vmatprep.subr.bf16.mxu0 0
    %140 = vmatpush1.bf16.msra.mxu0 0
    %141 = vmatprep.subr.bf16.mxu0 0
    %142 = vmatpush1.bf16.msra.mxu0 0
    %143 = vmatprep.subr.bf16.mxu0 0
    %144 = vmatpush1.bf16.msra.mxu0 0
    %145 = vmatprep.subr.bf16.mxu0 0
    %146 = vmatpush1.bf16.msra.mxu0 0
    %147 = vmatprep.subr.bf16.mxu0 0
    %148 = vmatpush1.bf16.msra.mxu0 0
    %149 = vmatprep.subr.bf16.mxu0 0
    %150 = vmatpush1.bf16.msra.mxu0 0
    %151 = vmatprep.subr.bf16.mxu0 0
    %152 = vmatpush1.bf16.msra.mxu0 0
    %153 = vmatprep.subr.bf16.mxu0 0
    %154 = vmatpush1.bf16.msra.mxu0 0
    %155 = vmatprep.subr.bf16.mxu0 0
    %156 = vmatpush1.bf16.msra.mxu0 0
    %157 = vmatprep.subr.bf16.mxu0 0
    %158 = vmatpush1.bf16.msra.mxu0 0
    %159 = vmatprep.subr.bf16.mxu0 0
    %160 = vmatpush1.bf16.msra.mxu0 0
    %161 = vmatprep.subr.bf16.mxu0 0
    %162 = vmatpush1.bf16.msra.mxu0 0
    %163 = vmatprep.mubr.bf16.mxu0 0
    %164 = vmatmul.mubr.bf16.gmra.mrb[0].mxu0 %v125
    %v165 = vpop.f32.mrb[0].mxu0
    %v166 = vadd.f32 %v117, %v165
    %v167 = vpop.f32.mrb[0].mxu0
    %v168 = vpop.f32.mrb[0].mxu0
    %v169 = vadd.f32 %v117, %v168
    %v170 = vpop.f32.mrb[0].mxu0
    %171 = vdwg.mxu0
    %v172 = vmax.f32 %v166, 0.0
    %v173 = vmax.f32 %v169, 0.0
    %v174 = vpack.c.bf16 %v173, %v172
    %v175 = vld [vmem:[#allocation7] sm:$0xf]
    %v176 = vld [vmem:[#allocation7 + $0x4] sm:$0xf]
    %v177 = vld [vmem:[#allocation7 + $0x8] sm:$0xf]
    %v178 = vld [vmem:[#allocation7 + $0xc] sm:$0xf]
    %v179 = vld [vmem:[#allocation7 + $0x10] sm:$0xf]
    %v180 = vld [vmem:[#allocation7 + $0x14] sm:$0xf]
    %v181 = vld [vmem:[#allocation7 + $0x18] sm:$0xf]
    %v182 = vld [vmem:[#allocation7 + $0x1c] sm:$0xf]
    %v183 = vld [vmem:[#allocation7 + $0x20] sm:$0xf]
    %v184 = vld [vmem:[#allocation7 + $0x24] sm:$0xf]
    %v185 = vld [vmem:[#allocation7 + $0x28] sm:$0xf]
    %v186 = vld [vmem:[#allocation7 + $0x2c] sm:$0xf]
    %v187 = vld [vmem:[#allocation7 + $0x30] sm:$0xf]
    %v188 = vld [vmem:[#allocation7 + $0x34] sm:$0xf]
    %v189 = vld [vmem:[#allocation7 + $0x38] sm:$0xf]
    %v190 = vld [vmem:[#allocation7 + $0x3c] sm:$0xf]
    %v191 = vld [vmem:[#allocation11 + $0x1] sm:$0x1]
    %v192 = vlaneseq
    %v193 = vshrl.u32 %v192, 7
    %v194 = vsub.s32 0, %v193
    %v195 = vrot.slane %v191, %v194
    %v212 = vunpack.c.l.b16 %v175
    %v213 = vunpack.c.l.b16 %v176
    %v214 = vunpack.c.l.b16 %v177
    %v215 = vunpack.c.l.b16 %v178
    %v216 = vunpack.c.l.b16 %v179
    %v217 = vunpack.c.l.b16 %v180
    %v218 = vunpack.c.l.b16 %v181
    %v219 = vunpack.c.l.b16 %v182
    %v220 = vunpack.c.l.b16 %v183
    %v221 = vunpack.c.l.b16 %v184
    %v222 = vunpack.c.l.b16 %v185
    %v223 = vunpack.c.l.b16 %v186
    %v224 = vunpack.c.l.b16 %v187
    %v225 = vunpack.c.l.b16 %v188
    %v226 = vunpack.c.l.b16 %v189
    %v227 = vunpack.c.l.b16 %v190
    %v228 = vpack.c.b16 %v213, %v212
    %v229 = vpack.c.b16 %v215, %v214
    %v230 = vpack.c.b16 %v217, %v216
    %v231 = vpack.c.b16 %v219, %v218
    %v232 = vpack.c.b16 %v221, %v220
    %v233 = vpack.c.b16 %v223, %v222
    %v234 = vpack.c.b16 %v225, %v224
    %v235 = vpack.c.b16 %v227, %v226
    %244 = vmatprep.subr.bf16.mxu0 0
    %245 = vmatpush1.bf16.msra.mxu0 %v228
    %246 = vmatprep.subr.bf16.mxu0 0
    %247 = vmatpush1.bf16.msra.mxu0 %v229
    %248 = vmatprep.subr.bf16.mxu0 0
    %249 = vmatpush1.bf16.msra.mxu0 %v230
    %250 = vmatprep.subr.bf16.mxu0 0
    %251 = vmatpush1.bf16.msra.mxu0 %v231
    %252 = vmatprep.subr.bf16.mxu0 0
    %253 = vmatpush1.bf16.msra.mxu0 %v232
    %254 = vmatprep.subr.bf16.mxu0 0
    %255 = vmatpush1.bf16.msra.mxu0 %v233
    %256 = vmatprep.subr.bf16.mxu0 0
    %257 = vmatpush1.bf16.msra.mxu0 %v234
    %258 = vmatprep.subr.bf16.mxu0 0
    %259 = vmatpush1.bf16.msra.mxu0 %v235
    %260 = vmatprep.subr.bf16.mxu0 0
    %261 = vmatpush1.bf16.msra.mxu0 0
    %262 = vmatprep.subr.bf16.mxu0 0
    %263 = vmatpush1.bf16.msra.mxu0 0
    %264 = vmatprep.subr.bf16.mxu0 0
    %265 = vmatpush1.bf16.msra.mxu0 0
    %266 = vmatprep.subr.bf16.mxu0 0
    %267 = vmatpush1.bf16.msra.mxu0 0
    %268 = vmatprep.subr.bf16.mxu0 0
    %269 = vmatpush1.bf16.msra.mxu0 0
    %270 = vmatprep.subr.bf16.mxu0 0
    %271 = vmatpush1.bf16.msra.mxu0 0
    %272 = vmatprep.subr.bf16.mxu0 0
    %273 = vmatpush1.bf16.msra.mxu0 0
    %274 = vmatprep.subr.bf16.mxu0 0
    %275 = vmatpush1.bf16.msra.mxu0 0
    %276 = vmatprep.mubr.bf16.mxu0 0
    %277 = vmatmul.mubr.bf16.gmra.mrb[0].mxu0 %v174
    %v278 = vpop.f32.mrb[0].mxu0
    %v279 = vadd.f32 %v195, %v278
    %v280 = vpop.f32.mrb[0].mxu0
    %v281 = vpop.f32.mrb[0].mxu0
    %v282 = vadd.f32 %v195, %v281
    %v283 = vpop.f32.mrb[0].mxu0
    %284 = vdwg.mxu0
    %v285 = vmax.f32 %v279, 0.0
    %v286 = vmax.f32 %v282, 0.0
    %v287 = vld [vmem:[#allocation13] sm:$0x3]
    %v288 = vrot.slane %v285, 4
    %v289 = vadd.f32 %v285, %v288
    %v290 = vrot.slane %v289, 2
    %v291 = vadd.f32 %v289, %v290
    %v292 = vrot.slane %v291, 1
    %v293 = vadd.f32 %v291, %v292
    %v294 = vrot.slane %v286, 4
    %v295 = vadd.f32 %v286, %v294
    %v296 = vrot.slane %v295, 2
    %v297 = vadd.f32 %v295, %v296
    %v298 = vrot.slane %v297, 1
    %v299 = vadd.f32 %v297, %v298
    %vm302 = vcmask 1041409
    %v303 = vsel %vm302, %v299, %v293
    %v305 = vadd.f32 %v287, %v303
    %306 = vst [vmem:[#allocation13] sm:$0x3] %v305
    // Predicated region
    $region54: #{tpu_custom_call.1} parent=1 // pred_check
      %p307 = pneg %p103
    $region55: #{tpu_custom_call.1} parent=1 // pred_check_branch
      %309 = sbr.rel (%p307) target = $region57
    $region56: #{tpu_custom_call.1} parent=1 // pred_region
      %v310 = vld [vmem:[#allocation13] sm:$0x3]
      %v311 = vpack.c.bf16 %v310, %v310
      %v312 = vld [vmem:[#allocation8] sm:$0xf]
      %v313 = vld [vmem:[#allocation8 + $0x4] sm:$0xf]
      %v314 = vld [vmem:[#allocation8 + $0x8] sm:$0xf]
      %v315 = vld [vmem:[#allocation8 + $0xc] sm:$0xf]
      %v316 = vld [vmem:[#allocation8 + $0x10] sm:$0xf]
      %v317 = vld [vmem:[#allocation8 + $0x14] sm:$0xf]
      %v318 = vld [vmem:[#allocation8 + $0x18] sm:$0xf]
      %v319 = vld [vmem:[#allocation8 + $0x1c] sm:$0xf]
      %v320 = vld [vmem:[#allocation8 + $0x20] sm:$0xf]
      %v321 = vld [vmem:[#allocation8 + $0x24] sm:$0xf]
      %v322 = vld [vmem:[#allocation8 + $0x28] sm:$0xf]
      %v323 = vld [vmem:[#allocation8 + $0x2c] sm:$0xf]
      %v324 = vld [vmem:[#allocation8 + $0x30] sm:$0xf]
      %v325 = vld [vmem:[#allocation8 + $0x34] sm:$0xf]
      %v326 = vld [vmem:[#allocation8 + $0x38] sm:$0xf]
      %v327 = vld [vmem:[#allocation8 + $0x3c] sm:$0xf]
      %v328 = vld [vmem:[#allocation11 + $0x2] sm:$0x1]
      %v329 = vlaneseq
      %v330 = vshrl.u32 %v329, 7
      %v331 = vsub.s32 0, %v330
      %v332 = vrot.slane %v328, %v331
      %v349 = vunpack.c.l.b16 %v312
      %v350 = vunpack.c.l.b16 %v313
      %v351 = vunpack.c.l.b16 %v314
      %v352 = vunpack.c.l.b16 %v315
      %v353 = vunpack.c.l.b16 %v316
      %v354 = vunpack.c.l.b16 %v317
      %v355 = vunpack.c.l.b16 %v318
      %v356 = vunpack.c.l.b16 %v319
      %v357 = vunpack.c.l.b16 %v320
      %v358 = vunpack.c.l.b16 %v321
      %v359 = vunpack.c.l.b16 %v322
      %v360 = vunpack.c.l.b16 %v323
      %v361 = vunpack.c.l.b16 %v324
      %v362 = vunpack.c.l.b16 %v325
      %v363 = vunpack.c.l.b16 %v326
      %v364 = vunpack.c.l.b16 %v327
      %v365 = vpack.c.b16 %v350, %v349
      %v366 = vpack.c.b16 %v352, %v351
      %v367 = vpack.c.b16 %v354, %v353
      %v368 = vpack.c.b16 %v356, %v355
      %v369 = vpack.c.b16 %v358, %v357
      %v370 = vpack.c.b16 %v360, %v359
      %v371 = vpack.c.b16 %v362, %v361
      %v372 = vpack.c.b16 %v364, %v363
      %381 = vmatprep.subr.bf16.mxu0 0
      %382 = vmatpush1.bf16.msra.mxu0 %v365
      %383 = vmatprep.subr.bf16.mxu0 0
      %384 = vmatpush1.bf16.msra.mxu0 %v366
      %385 = vmatprep.subr.bf16.mxu0 0
      %386 = vmatpush1.bf16.msra.mxu0 %v367
      %387 = vmatprep.subr.bf16.mxu0 0
      %388 = vmatpush1.bf16.msra.mxu0 %v368
      %389 = vmatprep.subr.bf16.mxu0 0
      %390 = vmatpush1.bf16.msra.mxu0 %v369
      %391 = vmatprep.subr.bf16.mxu0 0
      %392 = vmatpush1.bf16.msra.mxu0 %v370
      %393 = vmatprep.subr.bf16.mxu0 0
      %394 = vmatpush1.bf16.msra.mxu0 %v371
      %395 = vmatprep.subr.bf16.mxu0 0
      %396 = vmatpush1.bf16.msra.mxu0 %v372
      %397 = vmatprep.subr.bf16.mxu0 0
      %398 = vmatpush1.bf16.msra.mxu0 0
      %399 = vmatprep.subr.bf16.mxu0 0
      %400 = vmatpush1.bf16.msra.mxu0 0
      %401 = vmatprep.subr.bf16.mxu0 0
      %402 = vmatpush1.bf16.msra.mxu0 0
      %403 = vmatprep.subr.bf16.mxu0 0
      %404 = vmatpush1.bf16.msra.mxu0 0
      %405 = vmatprep.subr.bf16.mxu0 0
      %406 = vmatpush1.bf16.msra.mxu0 0
      %407 = vmatprep.subr.bf16.mxu0 0
      %408 = vmatpush1.bf16.msra.mxu0 0
      %409 = vmatprep.subr.bf16.mxu0 0
      %410 = vmatpush1.bf16.msra.mxu0 0
      %411 = vmatprep.subr.bf16.mxu0 0
      %412 = vmatpush1.bf16.msra.mxu0 0
      %413 = vmatprep.mubr.bf16.mxu0 0
      %414 = vmatmul.mubr.bf16.gmra.mrb[0].mxu0 %v311
      %v415 = vpop.f32.mrb[0].mxu0
      %v416 = vadd.f32 %v332, %v415
      %v417 = vpop.f32.mrb[0].mxu0
      %v418 = vpop.f32.mrb[0].mxu0
      %v419 = vpop.f32.mrb[0].mxu0
      %420 = vdwg.mxu0
      %v421 = vmax.f32 %v416, 0.0
      %v422 = vpack.c.bf16 %v421, %v421
      %v423 = vld [vmem:[#allocation10] sm:$0xf]
      %v424 = vld [vmem:[#allocation10 + $0x4] sm:$0xf]
      %v425 = vld [vmem:[#allocation10 + $0x8] sm:$0xf]
      %v426 = vld [vmem:[#allocation10 + $0xc] sm:$0xf]
      %v427 = vld [vmem:[#allocation10 + $0x10] sm:$0xf]
      %v428 = vld [vmem:[#allocation10 + $0x14] sm:$0xf]
      %v429 = vld [vmem:[#allocation10 + $0x18] sm:$0xf]
      %v430 = vld [vmem:[#allocation10 + $0x1c] sm:$0xf]
      %v431 = vld [vmem:[#allocation10 + $0x20] sm:$0xf]
      %v432 = vld [vmem:[#allocation10 + $0x24] sm:$0xf]
      %v433 = vld [vmem:[#allocation10 + $0x28] sm:$0xf]
      %v434 = vld [vmem:[#allocation10 + $0x2c] sm:$0xf]
      %v435 = vld [vmem:[#allocation10 + $0x30] sm:$0xf]
      %v436 = vld [vmem:[#allocation10 + $0x34] sm:$0xf]
      %v437 = vld [vmem:[#allocation10 + $0x38] sm:$0xf]
      %v438 = vld [vmem:[#allocation10 + $0x3c] sm:$0xf]
      %v439 = vld [vmem:[#allocation11 + $0x3] sm:$0x1]
      %v440 = vlaneseq
      %v441 = vshrl.u32 %v440, 7
      %v442 = vsub.s32 0, %v441
      %v443 = vrot.slane %v439, %v442
      %v460 = vunpack.c.l.b16 %v423
      %v461 = vunpack.c.l.b16 %v424
      %v462 = vunpack.c.l.b16 %v425
      %v463 = vunpack.c.l.b16 %v426
      %v464 = vunpack.c.l.b16 %v427
      %v465 = vunpack.c.l.b16 %v428
      %v466 = vunpack.c.l.b16 %v429
      %v467 = vunpack.c.l.b16 %v430
      %v468 = vunpack.c.l.b16 %v431
      %v469 = vunpack.c.l.b16 %v432
      %v470 = vunpack.c.l.b16 %v433
      %v471 = vunpack.c.l.b16 %v434
      %v472 = vunpack.c.l.b16 %v435
      %v473 = vunpack.c.l.b16 %v436
      %v474 = vunpack.c.l.b16 %v437
      %v475 = vunpack.c.l.b16 %v438
      %v476 = vpack.c.b16 %v461, %v460
      %v477 = vpack.c.b16 %v463, %v462
      %v478 = vpack.c.b16 %v465, %v464
      %v479 = vpack.c.b16 %v467, %v466
      %v480 = vpack.c.b16 %v469, %v468
      %v481 = vpack.c.b16 %v471, %v470
      %v482 = vpack.c.b16 %v473, %v472
      %v483 = vpack.c.b16 %v475, %v474
      %492 = vmatprep.subr.bf16.mxu0 0
      %493 = vmatpush1.bf16.msra.mxu0 %v476
      %494 = vmatprep.subr.bf16.mxu0 0
      %495 = vmatpush1.bf16.msra.mxu0 %v477
      %496 = vmatprep.subr.bf16.mxu0 0
      %497 = vmatpush1.bf16.msra.mxu0 %v478
      %498 = vmatprep.subr.bf16.mxu0 0
      %499 = vmatpush1.bf16.msra.mxu0 %v479
      %500 = vmatprep.subr.bf16.mxu0 0
      %501 = vmatpush1.bf16.msra.mxu0 %v480
      %502 = vmatprep.subr.bf16.mxu0 0
      %503 = vmatpush1.bf16.msra.mxu0 %v481
      %504 = vmatprep.subr.bf16.mxu0 0
      %505 = vmatpush1.bf16.msra.mxu0 %v482
      %506 = vmatprep.subr.bf16.mxu0 0
      %507 = vmatpush1.bf16.msra.mxu0 %v483
      %508 = vmatprep.subr.bf16.mxu0 0
      %509 = vmatpush1.bf16.msra.mxu0 0
      %510 = vmatprep.subr.bf16.mxu0 0
      %511 = vmatpush1.bf16.msra.mxu0 0
      %512 = vmatprep.subr.bf16.mxu0 0
      %513 = vmatpush1.bf16.msra.mxu0 0
      %514 = vmatprep.subr.bf16.mxu0 0
      %515 = vmatpush1.bf16.msra.mxu0 0
      %516 = vmatprep.subr.bf16.mxu0 0
      %517 = vmatpush1.bf16.msra.mxu0 0
      %518 = vmatprep.subr.bf16.mxu0 0
      %519 = vmatpush1.bf16.msra.mxu0 0
      %520 = vmatprep.subr.bf16.mxu0 0
      %521 = vmatpush1.bf16.msra.mxu0 0
      %522 = vmatprep.subr.bf16.mxu0 0
      %523 = vmatpush1.bf16.msra.mxu0 0
      %524 = vmatprep.mubr.bf16.mxu0 0
      %525 = vmatmul.mubr.bf16.gmra.mrb[0].mxu0 %v422
      %v526 = vpop.f32.mrb[0].mxu0
      %v527 = vadd.f32 %v443, %v526
      %v528 = vpop.f32.mrb[0].mxu0
      %v529 = vpop.f32.mrb[0].mxu0
      %v530 = vpop.f32.mrb[0].mxu0
      %531 = vdwg.mxu0
      %532 = vst [vmem:[#allocation13] sm:$0x3] %v527
    $region57: #{tpu_custom_call.1} parent=1 // pred_fallthru
      _
    // Predicated region
    $region58: #{tpu_custom_call.1} parent=1 // pred_check
      _
    $region59: #{tpu_custom_call.1} parent=1 // pred_check_branch
      %534 = sbr.rel (0) target = $region61
    $region60: #{tpu_custom_call.1} parent=1 // pred_region
      %s536 = ssub.s32 32, 32
      %537 = vsyncadd [#allocation4], %s536
      %s539 = sshll.u32 [#allocation13], 4
      %s540 = int_to_ptr.vmem [resolvable:$true] %s539
      %542 = dma.vmem_to_hbm [thread:$0]  %s540, 32, %s6, [#allocation4]
    $region61: #{tpu_custom_call.1} parent=1 // pred_fallthru
      _
    // Predicated region
    $region62: #{tpu_custom_call.1} parent=1 // pred_check
      _
    $region63: #{tpu_custom_call.1} parent=1 // pred_check_branch
      %544 = sbr.rel (0) target = $region65
    $region64: #{tpu_custom_call.1} parent=1 // pred_region
      %545 = dma.done [#allocation4], 32
    $region65: #{tpu_custom_call.1} parent=1 // pred_fallthru
      _
    %546 = vsyncpa [#allocation3], 1
    %547 = vsyncpa [#allocation6], 1
    %548 = vsyncpa [#allocation9], 1
    %549 = vsyncpa [#allocation12], 1
    %550 = vsyncpa [#allocation4], 1

// kernel: tpu_custom_call.1
$region0: #{tpu_custom_call.1}
  #allocation0 [shape = 'u32[]', space=smem, size = 0x4, offset = 0x4, fixed_abs, tag = 'smem constant byte address 0x4 - core index']
  #allocation1 [shape = 'u32[144,128]{1,0:T(1,128)}', space=vmem, size = 0x12000, scoped, tag = 'internal scratch']
  %s0 = inlined_call_operand.hbm [shape: f32[2,8,4], index: 0, kind: input, shape index: {}]
  %s1 = inlined_call_operand.hbm [shape: bf16[4,128], index: 1, kind: input, shape index: {}]
  %s2 = inlined_call_operand.hbm [shape: bf16[128,128], index: 2, kind: input, shape index: {}]
  %s3 = inlined_call_operand.hbm [shape: bf16[128,128], index: 3, kind: input, shape index: {}]
  %s4 = inlined_call_operand.hbm [shape: bf16[128,128], index: 4, kind: input, shape index: {}]
  %s5 = inlined_call_operand.hbm [shape: f32[8,128], index: 5, kind: input, shape index: {}]
  %s6 = inlined_call_operand.hbm [shape: f32[2,128], index: 6, kind: output, shape index: {}]
  %s7 = sld [smem:[#allocation0]]
  $region66: #{tpu_custom_call.1} parent=0
    _
  %s9 = ssub.s32 1, %s7
  %s10 = scalar_select 0, %s9, %s7
  $region1: #{tpu_custom_call.1} parent=0
    #allocation2 [shape = 'u8[8192]{0}', space=vmem, size = 0x2000, scoped, tag = 'input window, operand 0, single buffered']
    #allocation3 [shape = 's32[1]{0}', space=sflag, size = 0x4, scoped, tag = 'scoped memory for tpu_custom_call.1']
    #allocation4 [shape = 's32[1]{0}', space=sflag, size = 0x4, scoped, tag = 'scoped memory for tpu_custom_call.1']
    #allocation5 [shape = 'u8[1024]{0}', space=vmem, size = 0x400, scoped, tag = 'input window, operand 1, single buffered']
    #allocation6 [shape = 's32[1]{0}', space=sflag, size = 0x4, scoped, tag = 'scoped memory for tpu_custom_call.1']
    #allocation7 [shape = 'u8[32768]{0}', space=vmem, size = 0x8000, scoped, tag = 'input window, operand 2, single buffered']
    #allocation8 [shape = 'u8[32768]{0}', space=vmem, size = 0x8000, scoped, tag = 'input window, operand 3, single buffered']
    #allocation9 [shape = 's32[1]{0}', space=sflag, size = 0x4, scoped, tag = 'scoped memory for tpu_custom_call.1']
    #allocation10 [shape = 'u8[32768]{0}', space=vmem, size = 0x8000, scoped, tag = 'input window, operand 4, single buffered']
    #allocation11 [shape = 'u8[4096]{0}', space=vmem, size = 0x1000, scoped, tag = 'input window, operand 5, single buffered']
    #allocation12 [shape = 's32[1]{0}', space=sflag, size = 0x4, scoped, tag = 'scoped memory for tpu_custom_call.1']
    #allocation13 [shape = 'u8[1024]{0}', space=vmem, size = 0x400, scoped, tag = 'output window, operand 0, single buffered']
    %11 = vsyncpa [#allocation3], 0
    %12 = vsyncpa [#allocation6], 0
    %13 = vsyncpa [#allocation9], 0
    %14 = vsyncpa [#allocation12], 0
    %15 = vsyncpa [#allocation4], 0
    // Predicated region
    $region2: #{tpu_custom_call.1} parent=1 // pred_check
      _
    $region3: #{tpu_custom_call.1} parent=1 // pred_check_branch
      %17 = sbr.rel (0) target = $region5
    $region4: #{tpu_custom_call.1} parent=1 // pred_region
      %s19 = ssub.s32 256, 256
      %20 = vsyncadd [#allocation3], %s19
      %s21 = sshll.u32 [#allocation2], 4
      %s22 = int_to_ptr.vmem [resolvable:$true] %s21
      %27 = dma.hbm_to_vmem [thread:$0]  %s0, 256, %s22, [#allocation3], 128, 128, 8
    $region5: #{tpu_custom_call.1} parent=1 // pred_fallthru
      _
    // Predicated region
    $region6: #{tpu_custom_call.1} parent=1 // pred_check
      _
    $region7: #{tpu_custom_call.1} parent=1 // pred_check_branch
      %29 = sbr.rel (0) target = $region9
    $region8: #{tpu_custom_call.1} parent=1 // pred_region
      %s31 = ssub.s32 32, 32
      %32 = vsyncadd [#allocation6], %s31
      %s34 = sshll.u32 [#allocation5], 4
      %s35 = int_to_ptr.vmem [resolvable:$true] %s34
      %37 = dma.hbm_to_vmem [thread:$0]  %s1, 32, %s35, [#allocation6]
    $region9: #{tpu_custom_call.1} parent=1 // pred_fallthru
      _
    // Predicated region
    $region10: #{tpu_custom_call.1} parent=1 // pred_check
      _
    $region11: #{tpu_custom_call.1} parent=1 // pred_check_branch
      %39 = sbr.rel (0) target = $region13
    $region12: #{tpu_custom_call.1} parent=1 // pred_region
      %s41 = ssub.s32 1024, 1024
      %42 = vsyncadd [#allocation6], %s41
      %s43 = sshll.u32 [#allocation7], 4
      %s44 = int_to_ptr.vmem [resolvable:$true] %s43
      %49 = dma.hbm_to_vmem [thread:$0]  %s2, 1024, %s44, [#allocation6], 64, 64, 4
    $region13: #{tpu_custom_call.1} parent=1 // pred_fallthru
      _
    // Predicated region
    $region14: #{tpu_custom_call.1} parent=1 // pred_check
      _
    $region15: #{tpu_custom_call.1} parent=1 // pred_check_branch
      %51 = sbr.rel (0) target = $region17
    $region16: #{tpu_custom_call.1} parent=1 // pred_region
      %s53 = ssub.s32 1024, 1024
      %54 = vsyncadd [#allocation9], %s53
      %s55 = sshll.u32 [#allocation8], 4
      %s56 = int_to_ptr.vmem [resolvable:$true] %s55
      %61 = dma.hbm_to_vmem [thread:$0]  %s3, 1024, %s56, [#allocation9], 64, 64, 4
    $region17: #{tpu_custom_call.1} parent=1 // pred_fallthru
      _
    // Predicated region
    $region18: #{tpu_custom_call.1} parent=1 // pred_check
      _
    $region19: #{tpu_custom_call.1} parent=1 // pred_check_branch
      %63 = sbr.rel (0) target = $region21
    $region20: #{tpu_custom_call.1} parent=1 // pred_region
      %s65 = ssub.s32 1024, 1024
      %66 = vsyncadd [#allocation9], %s65
      %s67 = sshll.u32 [#allocation10], 4
      %s68 = int_to_ptr.vmem [resolvable:$true] %s67
      %73 = dma.hbm_to_vmem [thread:$0]  %s4, 1024, %s68, [#allocation9], 64, 64, 4
    $region21: #{tpu_custom_call.1} parent=1 // pred_fallthru
      _
    // Predicated region
    $region22: #{tpu_custom_call.1} parent=1 // pred_check
      _
    $region23: #{tpu_custom_call.1} parent=1 // pred_check_branch
      %75 = sbr.rel (0) target = $region25
    $region24: #{tpu_custom_call.1} parent=1 // pred_region
      %s77 = ssub.s32 128, 128
      %78 = vsyncadd [#allocation12], %s77
      %s80 = sshll.u32 [#allocation11], 4
      %s81 = int_to_ptr.vmem [resolvable:$true] %s80
      %83 = dma.hbm_to_vmem [thread:$0]  %s5, 128, %s81, [#allocation12]
    $region25: #{tpu_custom_call.1} parent=1 // pred_fallthru
      _
    // Predicated region
    $region26: #{tpu_custom_call.1} parent=1 // pred_check
      _
    $region27: #{tpu_custom_call.1} parent=1 // pred_check_branch
      %85 = sbr.rel (0) target = $region29
    $region28: #{tpu_custom_call.1} parent=1 // pred_region
      %86 = dma.done [#allocation3], 256
    $region29: #{tpu_custom_call.1} parent=1 // pred_fallthru
      _
    // Predicated region
    $region30: #{tpu_custom_call.1} parent=1 // pred_check
      _
    $region31: #{tpu_custom_call.1} parent=1 // pred_check_branch
      %88 = sbr.rel (0) target = $region33
    $region32: #{tpu_custom_call.1} parent=1 // pred_region
      %89 = dma.done [#allocation6], 32
    $region33: #{tpu_custom_call.1} parent=1 // pred_fallthru
      _
    // Predicated region
    $region34: #{tpu_custom_call.1} parent=1 // pred_check
      _
    $region35: #{tpu_custom_call.1} parent=1 // pred_check_branch
      %91 = sbr.rel (0) target = $region37
    $region36: #{tpu_custom_call.1} parent=1 // pred_region
      %92 = dma.done [#allocation6], 1024
    $region37: #{tpu_custom_call.1} parent=1 // pred_fallthru
      _
    // Predicated region
    $region38: #{tpu_custom_call.1} parent=1 // pred_check
      _
    $region39: #{tpu_custom_call.1} parent=1 // pred_check_branch
      %94 = sbr.rel (0) target = $region41
    $region40: #{tpu_custom_call.1} parent=1 // pred_region
      %95 = dma.done [#allocation9], 1024
    $region41: #{tpu_custom_call.1} parent=1 // pred_fallthru
      _
    // Predicated region
    $region42: #{tpu_custom_call.1} parent=1 // pred_check
      _
    $region43: #{tpu_custom_call.1} parent=1 // pred_check_branch
      %97 = sbr.rel (0) target = $region45
    $region44: #{tpu_custom_call.1} parent=1 // pred_region
      %98 = dma.done [#allocation9], 1024
    $region45: #{tpu_custom_call.1} parent=1 // pred_fallthru
      _
    // Predicated region
    $region46: #{tpu_custom_call.1} parent=1 // pred_check
      _
    $region47: #{tpu_custom_call.1} parent=1 // pred_check_branch
      %100 = sbr.rel (0) target = $region49
    $region48: #{tpu_custom_call.1} parent=1 // pred_region
      %101 = dma.done [#allocation12], 128
    $region49: #{tpu_custom_call.1} parent=1 // pred_fallthru
      _
    %p103 = scmp.eq.s32.totalorder 0, 0
    // Predicated region
    $region50: #{tpu_custom_call.1} parent=1 // pred_check
      %p104 = pneg %p103
    $region51: #{tpu_custom_call.1} parent=1 // pred_check_branch
      %106 = sbr.rel (%p104) target = $region53
    $region52: #{tpu_custom_call.1} parent=1 // pred_region
      %107 = vst [vmem:[#allocation13] sm:$0x3] 0.0
    $region53: #{tpu_custom_call.1} parent=1 // pred_fallthru
      _
    %v108 = vld [vmem:[#allocation2] sm:$0xff]
    %v109 = vld [vmem:[#allocation2 + $0x8] sm:$0xff]
    %v110 = vpack.c.bf16 %v108, %v108
    %v111 = vpack.c.bf16 %v109, %v109
    %v112 = vld [vmem:[#allocation5] sm:$0x3]
    %v113 = vld [vmem:[#allocation11] sm:$0x1]
    %v114 = vlaneseq
    %v115 = vshrl.u32 %v114, 7
    %v116 = vsub.s32 0, %v115
    %v117 = vrot.slane %v113, %v116
    %v120 = vunpack.c.l.b16 %v110
    %v121 = vunpack.c.l.b16 %v111
    %v122 = vpack.c.b16 %v121, %v120
    %vm123 = vcmask 31744
    %v125 = vsel %vm123, %v122, 0
    %vm127 = vcmask 1041408
    %v129 = vsel %vm127, %v112, 0
    %131 = vmatprep.subr.bf16.mxu0 0
    %132 = vmatpush1.bf16.msra.mxu0 %v129
    %133 = vmatprep.subr.bf16.mxu0 0
    %134 = vmatpush1.bf16.msra.mxu0 0
    %135 = vmatprep.subr.bf16.mxu0 0
    %136 = vmatpush1.bf16.msra.mxu0 0
    %137 = vmatprep.subr.bf16.mxu0 0
    %138 = vmatpush1.bf16.msra.mxu0 0
    %139 = vmatprep.subr.bf16.mxu0 0
    %140 = vmatpush1.bf16.msra.mxu0 0
    %141 = vmatprep.subr.bf16.mxu0 0
    %142 = vmatpush1.bf16.msra.mxu0 0
    %143 = vmatprep.subr.bf16.mxu0 0
    %144 = vmatpush1.bf16.msra.mxu0 0
    %145 = vmatprep.subr.bf16.mxu0 0
    %146 = vmatpush1.bf16.msra.mxu0 0
    %147 = vmatprep.subr.bf16.mxu0 0
    %148 = vmatpush1.bf16.msra.mxu0 0
    %149 = vmatprep.subr.bf16.mxu0 0
    %150 = vmatpush1.bf16.msra.mxu0 0
    %151 = vmatprep.subr.bf16.mxu0 0
    %152 = vmatpush1.bf16.msra.mxu0 0
    %153 = vmatprep.subr.bf16.mxu0 0
    %154 = vmatpush1.bf16.msra.mxu0 0
    %155 = vmatprep.subr.bf16.mxu0 0
    %156 = vmatpush1.bf16.msra.mxu0 0
    %157 = vmatprep.subr.bf16.mxu0 0
    %158 = vmatpush1.bf16.msra.mxu0 0
    %159 = vmatprep.subr.bf16.mxu0 0
    %160 = vmatpush1.bf16.msra.mxu0 0
    %161 = vmatprep.subr.bf16.mxu0 0
    %162 = vmatpush1.bf16.msra.mxu0 0
    %163 = vmatprep.mubr.bf16.mxu0 0
    %164 = vmatmul.mubr.bf16.gmra.mrb[0].mxu0 %v125
    %v165 = vpop.f32.mrb[0].mxu0
    %v166 = vadd.f32 %v117, %v165
    %v167 = vpop.f32.mrb[0].mxu0
    %v168 = vpop.f32.mrb[0].mxu0
    %v169 = vadd.f32 %v117, %v168
    %v170 = vpop.f32.mrb[0].mxu0
    %171 = vdwg.mxu0
    %v172 = vmax.f32 %v166, 0.0
    %v173 = vmax.f32 %v169, 0.0
    %v174 = vpack.c.bf16 %v173, %v172
    %v175 = vld [vmem:[#allocation7] sm:$0xf]
    %v176 = vld [vmem:[#allocation7 + $0x4] sm:$0xf]
    %v177 = vld [vmem:[#allocation7 + $0x8] sm:$0xf]
    %v178 = vld [vmem:[#allocation7 + $0xc] sm:$0xf]
    %v179 = vld [vmem:[#allocation7 + $0x10] sm:$0xf]
    %v180 = vld [vmem:[#allocation7 + $0x14] sm:$0xf]
    %v181 = vld [vmem:[#allocation7 + $0x18] sm:$0xf]
    %v182 = vld [vmem:[#allocation7 + $0x1c] sm:$0xf]
    %v183 = vld [vmem:[#allocation7 + $0x20] sm:$0xf]
    %v184 = vld [vmem:[#allocation7 + $0x24] sm:$0xf]
    %v185 = vld [vmem:[#allocation7 + $0x28] sm:$0xf]
    %v186 = vld [vmem:[#allocation7 + $0x2c] sm:$0xf]
    %v187 = vld [vmem:[#allocation7 + $0x30] sm:$0xf]
    %v188 = vld [vmem:[#allocation7 + $0x34] sm:$0xf]
    %v189 = vld [vmem:[#allocation7 + $0x38] sm:$0xf]
    %v190 = vld [vmem:[#allocation7 + $0x3c] sm:$0xf]
    %v191 = vld [vmem:[#allocation11 + $0x1] sm:$0x1]
    %v192 = vlaneseq
    %v193 = vshrl.u32 %v192, 7
    %v194 = vsub.s32 0, %v193
    %v195 = vrot.slane %v191, %v194
    %v212 = vunpack.c.l.b16 %v175
    %v213 = vunpack.c.l.b16 %v176
    %v214 = vunpack.c.l.b16 %v177
    %v215 = vunpack.c.l.b16 %v178
    %v216 = vunpack.c.l.b16 %v179
    %v217 = vunpack.c.l.b16 %v180
    %v218 = vunpack.c.l.b16 %v181
    %v219 = vunpack.c.l.b16 %v182
    %v220 = vunpack.c.l.b16 %v183
    %v221 = vunpack.c.l.b16 %v184
    %v222 = vunpack.c.l.b16 %v185
    %v223 = vunpack.c.l.b16 %v186
    %v224 = vunpack.c.l.b16 %v187
    %v225 = vunpack.c.l.b16 %v188
    %v226 = vunpack.c.l.b16 %v189
    %v227 = vunpack.c.l.b16 %v190
    %v228 = vpack.c.b16 %v213, %v212
    %v229 = vpack.c.b16 %v215, %v214
    %v230 = vpack.c.b16 %v217, %v216
    %v231 = vpack.c.b16 %v219, %v218
    %v232 = vpack.c.b16 %v221, %v220
    %v233 = vpack.c.b16 %v223, %v222
    %v234 = vpack.c.b16 %v225, %v224
    %v235 = vpack.c.b16 %v227, %v226
    %244 = vmatprep.subr.bf16.mxu0 0
    %245 = vmatpush1.bf16.msra.mxu0 %v228
    %246 = vmatprep.subr.bf16.mxu0 0
    %247 = vmatpush1.bf16.msra.mxu0 %v229
    %248 = vmatprep.subr.bf16.mxu0 0
    %249 = vmatpush1.bf16.msra.mxu0 %v230
    %250 = vmatprep.subr.bf16.mxu0 0
    %251 = vmatpush1.bf16.msra.mxu0 %v231
    %252 = vmatprep.subr.bf16.mxu0 0
    %253 = vmatpush1.bf16.msra.mxu0 %v232
    %254 = vmatprep.subr.bf16.mxu0 0
    %255 = vmatpush1.bf16.msra.mxu0 %v233
    %256 = vmatprep.subr.bf16.mxu0 0
    %257 = vmatpush1.bf16.msra.mxu0 %v234
    %258 = vmatprep.subr.bf16.mxu0 0
    %259 = vmatpush1.bf16.msra.mxu0 %v235
    %260 = vmatprep.subr.bf16.mxu0 0
    %261 = vmatpush1.bf16.msra.mxu0 0
    %262 = vmatprep.subr.bf16.mxu0 0
    %263 = vmatpush1.bf16.msra.mxu0 0
    %264 = vmatprep.subr.bf16.mxu0 0
    %265 = vmatpush1.bf16.msra.mxu0 0
    %266 = vmatprep.subr.bf16.mxu0 0
    %267 = vmatpush1.bf16.msra.mxu0 0
    %268 = vmatprep.subr.bf16.mxu0 0
    %269 = vmatpush1.bf16.msra.mxu0 0
    %270 = vmatprep.subr.bf16.mxu0 0
    %271 = vmatpush1.bf16.msra.mxu0 0
    %272 = vmatprep.subr.bf16.mxu0 0
    %273 = vmatpush1.bf16.msra.mxu0 0
    %274 = vmatprep.subr.bf16.mxu0 0
    %275 = vmatpush1.bf16.msra.mxu0 0
    %276 = vmatprep.mubr.bf16.mxu0 0
    %277 = vmatmul.mubr.bf16.gmra.mrb[0].mxu0 %v174
    %v278 = vpop.f32.mrb[0].mxu0
    %v279 = vadd.f32 %v195, %v278
    %v280 = vpop.f32.mrb[0].mxu0
    %v281 = vpop.f32.mrb[0].mxu0
    %v282 = vadd.f32 %v195, %v281
    %v283 = vpop.f32.mrb[0].mxu0
    %284 = vdwg.mxu0
    %v285 = vmax.f32 %v279, 0.0
    %v286 = vmax.f32 %v282, 0.0
    %v287 = vld [vmem:[#allocation13] sm:$0x3]
    %v288 = vrot.slane %v285, 4
    %v289 = vadd.f32 %v285, %v288
    %v290 = vrot.slane %v289, 2
    %v291 = vadd.f32 %v289, %v290
    %v292 = vrot.slane %v291, 1
    %v293 = vadd.f32 %v291, %v292
    %v294 = vrot.slane %v286, 4
    %v295 = vadd.f32 %v286, %v294
    %v296 = vrot.slane %v295, 2
    %v297 = vadd.f32 %v295, %v296
    %v298 = vrot.slane %v297, 1
    %v299 = vadd.f32 %v297, %v298
    %vm302 = vcmask 1041409
    %v303 = vsel %vm302, %v299, %v293
    %v305 = vadd.f32 %v287, %v303
    %306 = vst [vmem:[#allocation13] sm:$0x3] %v305
    // Predicated region
    $region54: #{tpu_custom_call.1} parent=1 // pred_check
      %p307 = pneg %p103
    $region55: #{tpu_custom_call.1} parent=1 // pred_check_branch
      %309 = sbr.rel (%p307) target = $region57
    $region56: #{tpu_custom_call.1} parent=1 // pred_region
      %v310 = vld [vmem:[#allocation13] sm:$0x3]
      %v311 = vpack.c.bf16 %v310, %v310
      %v312 = vld [vmem:[#allocation8] sm:$0xf]
      %v313 = vld [vmem:[#allocation8 + $0x4] sm:$0xf]
      %v314 = vld [vmem:[#allocation8 + $0x8] sm:$0xf]
      %v315 = vld [vmem:[#allocation8 + $0xc] sm:$0xf]
      %v316 = vld [vmem:[#allocation8 + $0x10] sm:$0xf]
      %v317 = vld [vmem:[#allocation8 + $0x14] sm:$0xf]
      %v318 = vld [vmem:[#allocation8 + $0x18] sm:$0xf]
      %v319 = vld [vmem:[#allocation8 + $0x1c] sm:$0xf]
      %v320 = vld [vmem:[#allocation8 + $0x20] sm:$0xf]
      %v321 = vld [vmem:[#allocation8 + $0x24] sm:$0xf]
      %v322 = vld [vmem:[#allocation8 + $0x28] sm:$0xf]
      %v323 = vld [vmem:[#allocation8 + $0x2c] sm:$0xf]
      %v324 = vld [vmem:[#allocation8 + $0x30] sm:$0xf]
      %v325 = vld [vmem:[#allocation8 + $0x34] sm:$0xf]
      %v326 = vld [vmem:[#allocation8 + $0x38] sm:$0xf]
      %v327 = vld [vmem:[#allocation8 + $0x3c] sm:$0xf]
      %v328 = vld [vmem:[#allocation11 + $0x2] sm:$0x1]
      %v329 = vlaneseq
      %v330 = vshrl.u32 %v329, 7
      %v331 = vsub.s32 0, %v330
      %v332 = vrot.slane %v328, %v331
      %v349 = vunpack.c.l.b16 %v312
      %v350 = vunpack.c.l.b16 %v313
      %v351 = vunpack.c.l.b16 %v314
      %v352 = vunpack.c.l.b16 %v315
      %v353 = vunpack.c.l.b16 %v316
      %v354 = vunpack.c.l.b16 %v317
      %v355 = vunpack.c.l.b16 %v318
      %v356 = vunpack.c.l.b16 %v319
      %v357 = vunpack.c.l.b16 %v320
      %v358 = vunpack.c.l.b16 %v321
      %v359 = vunpack.c.l.b16 %v322
      %v360 = vunpack.c.l.b16 %v323
      %v361 = vunpack.c.l.b16 %v324
      %v362 = vunpack.c.l.b16 %v325
      %v363 = vunpack.c.l.b16 %v326
      %v364 = vunpack.c.l.b16 %v327
      %v365 = vpack.c.b16 %v350, %v349
      %v366 = vpack.c.b16 %v352, %v351
      %v367 = vpack.c.b16 %v354, %v353
      %v368 = vpack.c.b16 %v356, %v355
      %v369 = vpack.c.b16 %v358, %v357
      %v370 = vpack.c.b16 %v360, %v359
      %v371 = vpack.c.b16 %v362, %v361
      %v372 = vpack.c.b16 %v364, %v363
      %381 = vmatprep.subr.bf16.mxu0 0
      %382 = vmatpush1.bf16.msra.mxu0 %v365
      %383 = vmatprep.subr.bf16.mxu0 0
      %384 = vmatpush1.bf16.msra.mxu0 %v366
      %385 = vmatprep.subr.bf16.mxu0 0
      %386 = vmatpush1.bf16.msra.mxu0 %v367
      %387 = vmatprep.subr.bf16.mxu0 0
      %388 = vmatpush1.bf16.msra.mxu0 %v368
      %389 = vmatprep.subr.bf16.mxu0 0
      %390 = vmatpush1.bf16.msra.mxu0 %v369
      %391 = vmatprep.subr.bf16.mxu0 0
      %392 = vmatpush1.bf16.msra.mxu0 %v370
      %393 = vmatprep.subr.bf16.mxu0 0
      %394 = vmatpush1.bf16.msra.mxu0 %v371
      %395 = vmatprep.subr.bf16.mxu0 0
      %396 = vmatpush1.bf16.msra.mxu0 %v372
      %397 = vmatprep.subr.bf16.mxu0 0
      %398 = vmatpush1.bf16.msra.mxu0 0
      %399 = vmatprep.subr.bf16.mxu0 0
      %400 = vmatpush1.bf16.msra.mxu0 0
      %401 = vmatprep.subr.bf16.mxu0 0
      %402 = vmatpush1.bf16.msra.mxu0 0
      %403 = vmatprep.subr.bf16.mxu0 0
      %404 = vmatpush1.bf16.msra.mxu0 0
      %405 = vmatprep.subr.bf16.mxu0 0
      %406 = vmatpush1.bf16.msra.mxu0 0
      %407 = vmatprep.subr.bf16.mxu0 0
      %408 = vmatpush1.bf16.msra.mxu0 0
      %409 = vmatprep.subr.bf16.mxu0 0
      %410 = vmatpush1.bf16.msra.mxu0 0
      %411 = vmatprep.subr.bf16.mxu0 0
      %412 = vmatpush1.bf16.msra.mxu0 0
      %413 = vmatprep.mubr.bf16.mxu0 0
      %414 = vmatmul.mubr.bf16.gmra.mrb[0].mxu0 %v311
      %v415 = vpop.f32.mrb[0].mxu0
      %v416 = vadd.f32 %v332, %v415
      %v417 = vpop.f32.mrb[0].mxu0
      %v418 = vpop.f32.mrb[0].mxu0
      %v419 = vpop.f32.mrb[0].mxu0
      %420 = vdwg.mxu0
      %v421 = vmax.f32 %v416, 0.0
      %v422 = vpack.c.bf16 %v421, %v421
      %v423 = vld [vmem:[#allocation10] sm:$0xf]
      %v424 = vld [vmem:[#allocation10 + $0x4] sm:$0xf]
      %v425 = vld [vmem:[#allocation10 + $0x8] sm:$0xf]
      %v426 = vld [vmem:[#allocation10 + $0xc] sm:$0xf]
      %v427 = vld [vmem:[#allocation10 + $0x10] sm:$0xf]
      %v428 = vld [vmem:[#allocation10 + $0x14] sm:$0xf]
      %v429 = vld [vmem:[#allocation10 + $0x18] sm:$0xf]
      %v430 = vld [vmem:[#allocation10 + $0x1c] sm:$0xf]
      %v431 = vld [vmem:[#allocation10 + $0x20] sm:$0xf]
      %v432 = vld [vmem:[#allocation10 + $0x24] sm:$0xf]
      %v433 = vld [vmem:[#allocation10 + $0x28] sm:$0xf]
      %v434 = vld [vmem:[#allocation10 + $0x2c] sm:$0xf]
      %v435 = vld [vmem:[#allocation10 + $0x30] sm:$0xf]
      %v436 = vld [vmem:[#allocation10 + $0x34] sm:$0xf]
      %v437 = vld [vmem:[#allocation10 + $0x38] sm:$0xf]
      %v438 = vld [vmem:[#allocation10 + $0x3c] sm:$0xf]
      %v439 = vld [vmem:[#allocation11 + $0x3] sm:$0x1]
      %v440 = vlaneseq
      %v441 = vshrl.u32 %v440, 7
      %v442 = vsub.s32 0, %v441
      %v443 = vrot.slane %v439, %v442
      %v460 = vunpack.c.l.b16 %v423
      %v461 = vunpack.c.l.b16 %v424
      %v462 = vunpack.c.l.b16 %v425
      %v463 = vunpack.c.l.b16 %v426
      %v464 = vunpack.c.l.b16 %v427
      %v465 = vunpack.c.l.b16 %v428
      %v466 = vunpack.c.l.b16 %v429
      %v467 = vunpack.c.l.b16 %v430
      %v468 = vunpack.c.l.b16 %v431
      %v469 = vunpack.c.l.b16 %v432
      %v470 = vunpack.c.l.b16 %v433
      %v471 = vunpack.c.l.b16 %v434
      %v472 = vunpack.c.l.b16 %v435
      %v473 = vunpack.c.l.b16 %v436
      %v474 = vunpack.c.l.b16 %v437
      %v475 = vunpack.c.l.b16 %v438
      %v476 = vpack.c.b16 %v461, %v460
      %v477 = vpack.c.b16 %v463, %v462
      %v478 = vpack.c.b16 %v465, %v464
      %v479 = vpack.c.b16 %v467, %v466
      %v480 = vpack.c.b16 %v469, %v468
      %v481 = vpack.c.b16 %v471, %v470
      %v482 = vpack.c.b16 %v473, %v472
      %v483 = vpack.c.b16 %v475, %v474
      %492 = vmatprep.subr.bf16.mxu0 0
      %493 = vmatpush1.bf16.msra.mxu0 %v476
      %494 = vmatprep.subr.bf16.mxu0 0
      %495 = vmatpush1.bf16.msra.mxu0 %v477
      %496 = vmatprep.subr.bf16.mxu0 0
      %497 = vmatpush1.bf16.msra.mxu0 %v478
      %498 = vmatprep.subr.bf16.mxu0 0
      %499 = vmatpush1.bf16.msra.mxu0 %v479
      %500 = vmatprep.subr.bf16.mxu0 0
      %501 = vmatpush1.bf16.msra.mxu0 %v480
      %502 = vmatprep.subr.bf16.mxu0 0
      %503 = vmatpush1.bf16.msra.mxu0 %v481
      %504 = vmatprep.subr.bf16.mxu0 0
      %505 = vmatpush1.bf16.msra.mxu0 %v482
      %506 = vmatprep.subr.bf16.mxu0 0
      %507 = vmatpush1.bf16.msra.mxu0 %v483
      %508 = vmatprep.subr.bf16.mxu0 0
      %509 = vmatpush1.bf16.msra.mxu0 0
      %510 = vmatprep.subr.bf16.mxu0 0
      %511 = vmatpush1.bf16.msra.mxu0 0
      %512 = vmatprep.subr.bf16.mxu0 0
      %513 = vmatpush1.bf16.msra.mxu0 0
      %514 = vmatprep.subr.bf16.mxu0 0
      %515 = vmatpush1.bf16.msra.mxu0 0
      %516 = vmatprep.subr.bf16.mxu0 0
      %517 = vmatpush1.bf16.msra.mxu0 0
      %518 = vmatprep.subr.bf16.mxu0 0
      %519 = vmatpush1.bf16.msra.mxu0 0
      %520 = vmatprep.subr.bf16.mxu0 0
      %521 = vmatpush1.bf16.msra.mxu0 0
      %522 = vmatprep.subr.bf16.mxu0 0
      %523 = vmatpush1.bf16.msra.mxu0 0
      %524 = vmatprep.mubr.bf16.mxu0 0
      %525 = vmatmul.mubr.bf16.gmra.mrb[0].mxu0 %v422
      %v526 = vpop.f32.mrb[0].mxu0
      %v527 = vadd.f32 %v443, %v526
      %v528 = vpop.f32.mrb[0].mxu0
      %v529 = vpop.f32.mrb[0].mxu0
      %v530 = vpop.f32.mrb[0].mxu0
      %531 = vdwg.mxu0
      %532 = vst [vmem:[#allocation13] sm:$0x3] %v527
    $region57: #{tpu_custom_call.1} parent=1 // pred_fallthru
      _
    // Predicated region
    $region58: #{tpu_custom_call.1} parent=1 // pred_check
      _
    $region59: #{tpu_custom_call.1} parent=1 // pred_check_branch
      %534 = sbr.rel (0) target = $region61
    $region60: #{tpu_custom_call.1} parent=1 // pred_region
      %s536 = ssub.s32 32, 32
      %537 = vsyncadd [#allocation4], %s536
      %s539 = sshll.u32 [#allocation13], 4
      %s540 = int_to_ptr.vmem [resolvable:$true] %s539
      %542 = dma.vmem_to_hbm [thread:$0]  %s540, 32, %s6, [#allocation4]
    $region61: #{tpu_custom_call.1} parent=1 // pred_fallthru
      _
    // Predicated region
    $region62: #{tpu_custom_call.1} parent=1 // pred_check
      _
    $region63: #{tpu_custom_call.1} parent=1 // pred_check_branch
      %544 = sbr.rel (0) target = $region65
    $region64: #{tpu_custom_call.1} parent=1 // pred_region
      %545 = dma.done [#allocation4], 32
    $region65: #{tpu_custom_call.1} parent=1 // pred_fallthru
      _
    %546 = vsyncpa [#allocation3], 1
    %547 = vsyncpa [#allocation6], 1
    %548 = vsyncpa [#allocation9], 1
    %549 = vsyncpa [#allocation12], 1
    %550 = vsyncpa [#allocation4], 1

</llo_original>
